<compile_context>
chip_gen: v7x
topology: tpu7x:2x2x1
jax: 0.10.0
libtpu: 0.0.40
codegen_flags: <defaults>
</compile_context>

<pallas_src>
import jax
import jax.numpy as jnp
from jax.experimental import pallas as pl
from jax.experimental.pallas import tpu as pltpu


# ---------------------------------------------------------------------------
# Fused kernel (one batch tile per grid step)
# ---------------------------------------------------------------------------
def _generator_kernel(s_z_ref, z_ref, g_ref,
                      w1_ref, b1_ref, s1_ref,
                      w2_ref, b2_ref, s2_ref,
                      w3_ref, b3_ref, s3_ref,
                      w4_ref, b4_ref,
                      state_ref, action_ref):
    def fused_layer(x, w_ref, b_ref, slope_ref=None):
        w = w_ref[...]
        # Cast activation to weight dtype once per matmul (bf16 path);
        # accumulate in f32, keep f32 activations between layers.
        y = jnp.dot(x.astype(w.dtype), w, preferred_element_type=jnp.float32)
        y = y + b_ref[...]
        if slope_ref is not None:
            slope = slope_ref[...]            # (1, N) per-column slopes
            y = jnp.where(y >= 0.0, y, slope * y)
        return y

    x = s_z_ref[...]
    h1 = fused_layer(x, w1_ref, b1_ref, s1_ref)    # (TB, 4S)  [nm1|nm2|nm3|ag]
    h2 = fused_layer(h1, w2_ref, b2_ref, s2_ref)   # (TB, 5S)  [d_emb|a_emb|s_emb|ag_h]
    h3 = fused_layer(h2, w3_ref, b3_ref, s3_ref)   # (TB, 6E+Ap)[mean_h|var_h|logits]

    six_e = w4_ref.shape[0]                        # 6E (vreg-aligned split)
    head_hid = h3[:, :six_e]
    logits = h3[:, six_e:]

    mv = fused_layer(head_hid, w4_ref, b4_ref)     # (TB, 6E)  [means(3E)|vars(3E)]
    three_e = six_e // 2
    means = mv[:, :three_e]
    variances = mv[:, three_e:]
    # state_rep = concat(z_d, z_a, z_s) falls out already concatenated.
    state_ref[...] = (z_ref[...] * variances + means).astype(state_ref.dtype)

    # Hard Gumbel-softmax forward value == one_hot(argmax(logits + gumbel));
    # softmax / temperature are monotone so they don't change the argmax
    # (straight-through only matters for gradients).  Padded logit columns
    # carry a -1e30 bias and can never win.
    y = logits + g_ref[...]
    a_pad = y.shape[-1]
    col = jax.lax.broadcasted_iota(jnp.int32, y.shape, 1)
    m = jnp.max(y, axis=-1, keepdims=True)
    # first (lowest-index) maximum, matching torch argmax tie-breaking
    first = jnp.min(jnp.where(y >= m, col, a_pad), axis=-1, keepdims=True)
    action_ref[...] = (col == first).astype(action_ref.dtype)


# ---------------------------------------------------------------------------
# Wrapper
# ---------------------------------------------------------------------------
def woz_generator_forward(s_z, z1, z2, z3, g, packed, *, block_b=512):
    """s_z:(B,S), z1/z2/z3:(B,E), g:(B,300) Gumbel noise, packed = pack_params().

    block_b: batch tile.  Guidance: single-TC chips (v5e/v6e) -> largest tile
    that fits; v7x -> pick block_b so the grid has >= 2 tiles for megacore.
    Returns (state_rep (B,3E), action_rep (B,300)).
    """
    B, S = s_z.shape
    z_cat = jnp.concatenate([z1, z2, z3], axis=-1)        # (B, 3E) -- wrapper-side
    three_e = z_cat.shape[1]
    six_e = packed["w4"].shape[0]
    assert six_e == 2 * three_e
    A = g.shape[1]
    A_pad = packed["w3"].shape[1] - six_e
    g_pad = jnp.pad(g, ((0, 0), (0, A_pad - A))) if A_pad != A else g

    TB = min(block_b, B)
    if TB != B:
        TB = max(8, (TB // 8) * 8)                        # sublane-aligned tiles
    grid = (pl.cdiv(B, TB),)

    def batch_spec(width):                                # tiled over batch
        return pl.BlockSpec((TB, width), lambda i: (i, 0))

    def const_spec(arr):                                  # VMEM-resident weights
        return pl.BlockSpec(arr.shape, lambda i: (0, 0))

    weight_args = [packed[k] for k in
                   ("w1", "b1", "s1", "w2", "b2", "s2",
                    "w3", "b3", "s3", "w4", "b4")]

    in_specs = ([batch_spec(S), batch_spec(three_e), batch_spec(A_pad)]
                + [const_spec(a) for a in weight_args])
    out_specs = (batch_spec(three_e), batch_spec(A_pad))
    out_shape = (jax.ShapeDtypeStruct((B, three_e), jnp.float32),
                 jax.ShapeDtypeStruct((B, A_pad), jnp.float32))

    macs_per_row = (S * 4 * S + 4 * S * 5 * S
                    + 5 * S * (six_e + A_pad) + six_e * six_e)
    bytes_accessed = int(s_z.nbytes + z_cat.nbytes + g_pad.nbytes
                         + B * three_e * 4 + B * A_pad * 4
                         + sum(int(a.nbytes) for a in weight_args))
    cost = pl.CostEstimate(flops=2 * B * macs_per_row, transcendentals=0,
                           bytes_accessed=bytes_accessed)

    state_rep, action_pad = pl.pallas_call(
        _generator_kernel,
        grid=grid,
        in_specs=in_specs,
        out_specs=out_specs,
        out_shape=out_shape,
        compiler_params=pltpu.CompilerParams(
            dimension_semantics=("parallel",),            # megacore batch split
            vmem_limit_bytes=32 * 1024 * 1024),
        cost_estimate=cost,
    )(s_z, z_cat, g_pad, *weight_args)

    return state_rep, action_pad[:, :A]


# ---------------------------------------------------------------------------
# Parameters: PyTorch-layout per-layer params, then offline fusion packing.
# Every Linear is stored as W:(in_features, out_features), b:(1, out_features).
# ---------------------------------------------------------------------------
def _linear_params(key, din, dout):
    kw, kb = jax.random.split(key)
    bound = 1.0 / (din ** 0.5)
    w = jax.random.uniform(kw, (din, dout), minval=-bound, maxval=bound,
                           dtype=jnp.float32)
    b = jax.random.uniform(kb, (1, dout), minval=-bound, maxval=bound,
                           dtype=jnp.float32)
    return w, b


def init_params(key, state_noise_dim, vae_embed_size, action_out=300):
    S, E, A = state_noise_dim, vae_embed_size, action_out
    layer_dims = {}
    for k in (1, 2, 3):
        layer_dims[f"nm{k}_1"] = (S, S)
        layer_dims[f"nm{k}_2"] = (S, S)
    for h in ("d_mean", "d_var", "a_mean", "a_var", "s_mean", "s_var"):
        layer_dims[f"{h}_1"] = (S, E)
        layer_dims[f"{h}_2"] = (E, E)
    layer_dims["ag_1"] = (S, S)
    layer_dims["ag_2"] = (S, 2 * S)
    layer_dims["ag_3"] = (2 * S, A)

    params = {}
    keys = jax.random.split(key, len(layer_dims))
    for (prefix, (din, dout)), kk in zip(layer_dims.items(), keys):
        stem, idx = prefix.rsplit("_", 1)
        w, b = _linear_params(kk, din, dout)
        params[f"{stem}_w{idx}"] = w
        params[f"{stem}_b{idx}"] = b
    return params


def pack_params(params, S, E, A, *, weight_dtype=jnp.float32):
    """Fuse/block-diagonalise the 22 Linears into 4 lane-dense matmuls."""
    A_pad = max(128, ((A + 127) // 128) * 128)
    f32 = jnp.float32

    # L1: every consumer of s_z, concatenated along N.
    w1 = jnp.concatenate([params["nm1_w1"], params["nm2_w1"],
                          params["nm3_w1"], params["ag_w1"]], axis=1)
    b1 = jnp.concatenate([params["nm1_b1"], params["nm2_b1"],
                          params["nm3_b1"], params["ag_b1"]], axis=1)
    # slopes: LeakyReLU(0.01) / LeakyReLU(0.01) / LeakyReLU(True)->1.0 / ReLU->0.0
    s1 = jnp.concatenate([jnp.full((1, S), 0.01, f32),
                          jnp.full((1, S), 0.01, f32),
                          jnp.full((1, S), 1.0, f32),
                          jnp.zeros((1, S), f32)], axis=1)

    # L2: block-diagonal over the four independent branches.
    w2 = jnp.zeros((4 * S, 5 * S), f32)
    w2 = w2.at[0 * S:1 * S, 0 * S:1 * S].set(params["nm1_w2"])
    w2 = w2.at[1 * S:2 * S, 1 * S:2 * S].set(params["nm2_w2"])
    w2 = w2.at[2 * S:3 * S, 2 * S:3 * S].set(params["nm3_w2"])
    w2 = w2.at[3 * S:4 * S, 3 * S:5 * S].set(params["ag_w2"])
    b2 = jnp.concatenate([params["nm1_b2"], params["nm2_b2"],
                          params["nm3_b2"], params["ag_b2"]], axis=1)
    s2 = jnp.concatenate([jnp.full((1, 3 * S), 0.01, f32),
                          jnp.zeros((1, 2 * S), f32)], axis=1)

    # L3: six head layer-1s -> [mean-hiddens | var-hiddens], plus ag layer-3
    # producing the (padded) action logits.
    w3 = jnp.zeros((5 * S, 6 * E + A_pad), f32)
    for i, h in enumerate(("d", "a", "s")):
        w3 = w3.at[i * S:(i + 1) * S, i * E:(i + 1) * E].set(params[f"{h}_mean_w1"])
        w3 = w3.at[i * S:(i + 1) * S,
                   3 * E + i * E:3 * E + (i + 1) * E].set(params[f"{h}_var_w1"])
    w3 = w3.at[3 * S:5 * S, 6 * E:6 * E + A].set(params["ag_w3"])
    b3 = jnp.concatenate(
        [params["d_mean_b1"], params["a_mean_b1"], params["s_mean_b1"],
         params["d_var_b1"], params["a_var_b1"], params["s_var_b1"],
         params["ag_b3"],
         jnp.full((1, A_pad - A), -1e30, f32)],    # padded logits never win
        axis=1)
    s3 = jnp.concatenate([jnp.full((1, 6 * E), 0.01, f32),
                          jnp.full((1, A_pad), 1.0, f32)], axis=1)

    # L4: block-diagonal over the six head layer-2s -> [means(3E) | vars(3E)].
    order = ("d_mean", "a_mean", "s_mean", "d_var", "a_var", "s_var")
    w4 = jnp.zeros((6 * E, 6 * E), f32)
    for i, h in enumerate(order):
        w4 = w4.at[i * E:(i + 1) * E, i * E:(i + 1) * E].set(params[f"{h}_w2"])
    b4 = jnp.concatenate([params[f"{h}_b2"] for h in order], axis=1)

    packed = {"w1": w1, "b1": b1, "s1": s1, "w2": w2, "b2": b2, "s2": s2,
              "w3": w3, "b3": b3, "s3": s3, "w4": w4, "b4": b4}
    if weight_dtype != jnp.float32:
        # bf16 matmul weights are fine on v5e/v6e/v7x (bf16-native MXU);
        # biases/slopes stay f32, accumulation is f32.
        for k in ("w1", "w2", "w3", "w4"):
            packed[k] = packed[k].astype(weight_dtype)
    return packed


# ---------------------------------------------------------------------------
# Pure-JAX unfused reference (mirrors the PyTorch module layer-by-layer)
# ---------------------------------------------------------------------------
def reference_forward(s_z, z1, z2, z3, g, params):
    p = params

    def lin(x, wn, bn):
        w = p[wn]
        return jnp.dot(x.astype(w.dtype), w,
                       preferred_element_type=jnp.float32) + p[bn]

    def leaky(x, s=0.01):
        return jnp.where(x >= 0, x, s * x)

    def nm(k, slope1):
        h = leaky(lin(s_z, f"nm{k}_w1", f"nm{k}_b1"), slope1)
        return leaky(lin(h, f"nm{k}_w2", f"nm{k}_b2"), 0.01)

    d_emb, a_emb, s_emb = nm(1, 0.01), nm(2, 0.01), nm(3, 1.0)

    def head(x, name):
        h = leaky(lin(x, f"{name}_w1", f"{name}_b1"), 0.01)
        return lin(h, f"{name}_w2", f"{name}_b2")

    z_d = z1 * head(d_emb, "d_var") + head(d_emb, "d_mean")
    z_a = z2 * head(a_emb, "a_var") + head(a_emb, "a_mean")
    z_s = z3 * head(s_emb, "s_var") + head(s_emb, "s_mean")
    state_rep = jnp.concatenate([z_d, z_a, z_s], axis=-1)

    h = jax.nn.relu(lin(s_z, "ag_w1", "ag_b1"))
    h = jax.nn.relu(lin(h, "ag_w2", "ag_b2"))
    logits = lin(h, "ag_w3", "ag_b3")
    y = logits + g
    action_rep = jax.nn.one_hot(jnp.argmax(y, axis=-1), y.shape[-1],
                                dtype=jnp.float32)
    return state_rep, action_rep


if __name__ == "__main__":
    S = 64      # config.state_noise_dim
    E = 64      # config.vae_embed_size (state_out_size)
    A = 300     # action_gen output width (gumble_length_index == [300])
    B = 8       # small correctness batch

    key = jax.random.PRNGKey(0)
    k_p, k_small, k_big = jax.random.split(key, 3)
    params = init_params(k_p, S, E, A)
    packed_f32 = pack_params(params, S, E, A)

    def make_inputs(k, batch):
        ks = jax.random.split(k, 5)
        s_z = jax.random.normal(ks[0], (batch, S), dtype=jnp.float32)
        z1 = jax.random.normal(ks[1], (batch, E), dtype=jnp.float32)
        z2 = jax.random.normal(ks[2], (batch, E), dtype=jnp.float32)
        z3 = jax.random.normal(ks[3], (batch, E), dtype=jnp.float32)
        u = jax.random.uniform(ks[4], (batch, A), dtype=jnp.float32)
        g = -jnp.log(-jnp.log(u + 1e-20) + 1e-20)      # Gumbel(0,1) noise
        return s_z, z1, z2, z3, g

    # --- small f32 correctness run (single tile) --------------------------
    s_z, z1, z2, z3, g = make_inputs(k_small, B)
    state_rep, action_rep = woz_generator_forward(s_z, z1, z2, z3, g, packed_f32)
    jax.block_until_ready((state_rep, action_rep))

    ref_state, ref_action = reference_forward(s_z, z1, z2, z3, g, params)
    assert state_rep.shape == (B, 3 * E), state_rep.shape
    assert action_rep.shape == (B, A), action_rep.shape
    assert jnp.allclose(state_rep, ref_state, atol=1e-4, rtol=1e-4)
    assert jnp.array_equal(action_rep, ref_action)

    # --- larger batch: multi-tile parallel grid + bf16 weight path --------
    B2 = 1024
    s_z2, z1b, z2b, z3b, g2 = make_inputs(k_big, B2)
    packed_bf16 = pack_params(params, S, E, A, weight_dtype=jnp.bfloat16)
    params_bf16 = {k: (v.astype(jnp.bfloat16) if "_w" in k else v)
                   for k, v in params.items()}
    s_z2_bf16 = s_z2.astype(jnp.bfloat16)
    state2, action2 = woz_generator_forward(
        s_z2_bf16, z1b, z2b, z3b, g2, packed_bf16, block_b=256)
    jax.block_until_ready((state2, action2))

    ref_state2, ref_action2 = reference_forward(
        s_z2_bf16, z1b, z2b, z3b, g2, params_bf16)
    assert state2.shape == (B2, 3 * E) and action2.shape == (B2, A)
    assert jnp.allclose(state2, ref_state2, atol=2e-2, rtol=2e-2)
    assert jnp.array_equal(jnp.sum(action2, axis=-1),
                           jnp.ones((B2,), jnp.float32))      # valid one-hots
    match = jnp.mean((jnp.argmax(action2, -1) ==
                      jnp.argmax(ref_action2, -1)).astype(jnp.float32))
    assert float(match) > 0.97

    print("KERNEL_OK")
</pallas_src>

<mosaic_0001>
module attributes {stable_mosaic.version = 11 : i64} {
  func.func @_generator_kernel(%arg0: i32, %arg1: memref<8x64xf32, #tpu.memory_space<vmem>>, %arg2: memref<8x192xf32, #tpu.memory_space<vmem>>, %arg3: memref<8x384xf32, #tpu.memory_space<vmem>>, %arg4: memref<64x256xf32, #tpu.memory_space<vmem>>, %arg5: memref<1x256xf32, #tpu.memory_space<vmem>>, %arg6: memref<1x256xf32, #tpu.memory_space<vmem>>, %arg7: memref<256x320xf32, #tpu.memory_space<vmem>>, %arg8: memref<1x320xf32, #tpu.memory_space<vmem>>, %arg9: memref<1x320xf32, #tpu.memory_space<vmem>>, %arg10: memref<320x768xf32, #tpu.memory_space<vmem>>, %arg11: memref<1x768xf32, #tpu.memory_space<vmem>>, %arg12: memref<1x768xf32, #tpu.memory_space<vmem>>, %arg13: memref<384x384xf32, #tpu.memory_space<vmem>>, %arg14: memref<1x384xf32, #tpu.memory_space<vmem>>, %arg15: memref<8x192xf32, #tpu.memory_space<vmem>>, %arg16: memref<8x384xf32, #tpu.memory_space<vmem>>) attributes {dimension_semantics = [#tpu.dimension_semantics<parallel>], iteration_bounds = array<i64: 1>, scalar_prefetch = 0 : i64, scratch_operands = 0 : i64, tpu.core_type = #tpu.core_type<tc>, window_params = [{transform_indices = @transform_0, window_bounds = array<i64: 8, 64>}, {transform_indices = @transform_1, window_bounds = array<i64: 8, 192>}, {transform_indices = @transform_2, window_bounds = array<i64: 8, 384>}, {pipeline_mode = #tpu.pipeline_mode<synchronous>, transform_indices = @transform_3, window_bounds = array<i64: 64, 256>}, {pipeline_mode = #tpu.pipeline_mode<synchronous>, transform_indices = @transform_4, window_bounds = array<i64: 1, 256>}, {pipeline_mode = #tpu.pipeline_mode<synchronous>, transform_indices = @transform_5, window_bounds = array<i64: 1, 256>}, {pipeline_mode = #tpu.pipeline_mode<synchronous>, transform_indices = @transform_6, window_bounds = array<i64: 256, 320>}, {pipeline_mode = #tpu.pipeline_mode<synchronous>, transform_indices = @transform_7, window_bounds = array<i64: 1, 320>}, {pipeline_mode = #tpu.pipeline_mode<synchronous>, transform_indices = @transform_8, window_bounds = array<i64: 1, 320>}, {pipeline_mode = #tpu.pipeline_mode<synchronous>, transform_indices = @transform_9, window_bounds = array<i64: 320, 768>}, {pipeline_mode = #tpu.pipeline_mode<synchronous>, transform_indices = @transform_10, window_bounds = array<i64: 1, 768>}, {pipeline_mode = #tpu.pipeline_mode<synchronous>, transform_indices = @transform_11, window_bounds = array<i64: 1, 768>}, {pipeline_mode = #tpu.pipeline_mode<synchronous>, transform_indices = @transform_12, window_bounds = array<i64: 384, 384>}, {pipeline_mode = #tpu.pipeline_mode<synchronous>, transform_indices = @transform_13, window_bounds = array<i64: 1, 384>}, {transform_indices = @transform_14, window_bounds = array<i64: 8, 192>}, {transform_indices = @transform_15, window_bounds = array<i64: 8, 384>}]} {
    %c0 = arith.constant 0 : index
    %c0_0 = arith.constant 0 : index
    %0 = vector.load %arg1[%c0, %c0_0] : memref<8x64xf32, #tpu.memory_space<vmem>>, vector<8x64xf32>
    %c0_1 = arith.constant 0 : index
    %c0_2 = arith.constant 0 : index
    %1 = vector.load %arg4[%c0_1, %c0_2] : memref<64x256xf32, #tpu.memory_space<vmem>>, vector<64x256xf32>
    %cst = arith.constant dense<0.000000e+00> : vector<8x256xf32>
    %2 = tpu.matmul %0, %1, %cst {dimension_numbers = #tpu.dot_dimension_numbers<[1], [0], [0], [1], [0, 0, 1, 1], [], []>} : vector<8x64xf32>, vector<64x256xf32>, vector<8x256xf32> -> vector<8x256xf32>
    %c0_3 = arith.constant 0 : index
    %c0_4 = arith.constant 0 : index
    %3 = vector.load %arg5[%c0_3, %c0_4] : memref<1x256xf32, #tpu.memory_space<vmem>>, vector<1x256xf32>
    %4 = vector.broadcast %3 : vector<1x256xf32> to vector<8x256xf32>
    %5 = arith.addf %2, %4 : vector<8x256xf32>
    %c0_5 = arith.constant 0 : index
    %c0_6 = arith.constant 0 : index
    %6 = vector.load %arg6[%c0_5, %c0_6] : memref<1x256xf32, #tpu.memory_space<vmem>>, vector<1x256xf32>
    %cst_7 = arith.constant 0.000000e+00 : f32
    %7 = vector.broadcast %cst_7 : f32 to vector<8x256xf32>
    %8 = arith.cmpf oge, %5, %7 : vector<8x256xf32>
    %9 = vector.broadcast %6 : vector<1x256xf32> to vector<8x256xf32>
    %10 = arith.mulf %9, %5 : vector<8x256xf32>
    %11 = arith.select %8, %5, %10 : vector<8x256xi1>, vector<8x256xf32>
    %c0_8 = arith.constant 0 : index
    %c0_9 = arith.constant 0 : index
    %12 = vector.load %arg7[%c0_8, %c0_9] : memref<256x320xf32, #tpu.memory_space<vmem>>, vector<256x320xf32>
    %cst_10 = arith.constant dense<0.000000e+00> : vector<8x320xf32>
    %13 = tpu.matmul %11, %12, %cst_10 {dimension_numbers = #tpu.dot_dimension_numbers<[1], [0], [0], [1], [0, 0, 1, 1], [], []>} : vector<8x256xf32>, vector<256x320xf32>, vector<8x320xf32> -> vector<8x320xf32>
    %c0_11 = arith.constant 0 : index
    %c0_12 = arith.constant 0 : index
    %14 = vector.load %arg8[%c0_11, %c0_12] : memref<1x320xf32, #tpu.memory_space<vmem>>, vector<1x320xf32>
    %15 = vector.broadcast %14 : vector<1x320xf32> to vector<8x320xf32>
    %16 = arith.addf %13, %15 : vector<8x320xf32>
    %c0_13 = arith.constant 0 : index
    %c0_14 = arith.constant 0 : index
    %17 = vector.load %arg9[%c0_13, %c0_14] : memref<1x320xf32, #tpu.memory_space<vmem>>, vector<1x320xf32>
    %cst_15 = arith.constant 0.000000e+00 : f32
    %18 = vector.broadcast %cst_15 : f32 to vector<8x320xf32>
    %19 = arith.cmpf oge, %16, %18 : vector<8x320xf32>
    %20 = vector.broadcast %17 : vector<1x320xf32> to vector<8x320xf32>
    %21 = arith.mulf %20, %16 : vector<8x320xf32>
    %22 = arith.select %19, %16, %21 : vector<8x320xi1>, vector<8x320xf32>
    %c0_16 = arith.constant 0 : index
    %c0_17 = arith.constant 0 : index
    %23 = vector.load %arg10[%c0_16, %c0_17] : memref<320x768xf32, #tpu.memory_space<vmem>>, vector<320x768xf32>
    %cst_18 = arith.constant dense<0.000000e+00> : vector<8x768xf32>
    %24 = tpu.matmul %22, %23, %cst_18 {dimension_numbers = #tpu.dot_dimension_numbers<[1], [0], [0], [1], [0, 0, 1, 1], [], []>} : vector<8x320xf32>, vector<320x768xf32>, vector<8x768xf32> -> vector<8x768xf32>
    %c0_19 = arith.constant 0 : index
    %c0_20 = arith.constant 0 : index
    %25 = vector.load %arg11[%c0_19, %c0_20] : memref<1x768xf32, #tpu.memory_space<vmem>>, vector<1x768xf32>
    %26 = vector.broadcast %25 : vector<1x768xf32> to vector<8x768xf32>
    %27 = arith.addf %24, %26 : vector<8x768xf32>
    %c0_21 = arith.constant 0 : index
    %c0_22 = arith.constant 0 : index
    %28 = vector.load %arg12[%c0_21, %c0_22] : memref<1x768xf32, #tpu.memory_space<vmem>>, vector<1x768xf32>
    %cst_23 = arith.constant 0.000000e+00 : f32
    %29 = vector.broadcast %cst_23 : f32 to vector<8x768xf32>
    %30 = arith.cmpf oge, %27, %29 : vector<8x768xf32>
    %31 = vector.broadcast %28 : vector<1x768xf32> to vector<8x768xf32>
    %32 = arith.mulf %31, %27 : vector<8x768xf32>
    %33 = arith.select %30, %27, %32 : vector<8x768xi1>, vector<8x768xf32>
    %34 = vector.extract_strided_slice %33 {offsets = [0, 0], sizes = [8, 384], strides = [1, 1]} : vector<8x768xf32> to vector<8x384xf32>
    %35 = vector.extract_strided_slice %33 {offsets = [0, 384], sizes = [8, 384], strides = [1, 1]} : vector<8x768xf32> to vector<8x384xf32>
    %c0_24 = arith.constant 0 : index
    %c0_25 = arith.constant 0 : index
    %36 = vector.load %arg13[%c0_24, %c0_25] : memref<384x384xf32, #tpu.memory_space<vmem>>, vector<384x384xf32>
    %cst_26 = arith.constant dense<0.000000e+00> : vector<8x384xf32>
    %37 = tpu.matmul %34, %36, %cst_26 {dimension_numbers = #tpu.dot_dimension_numbers<[1], [0], [0], [1], [0, 0, 1, 1], [], []>} : vector<8x384xf32>, vector<384x384xf32>, vector<8x384xf32> -> vector<8x384xf32>
    %c0_27 = arith.constant 0 : index
    %c0_28 = arith.constant 0 : index
    %38 = vector.load %arg14[%c0_27, %c0_28] : memref<1x384xf32, #tpu.memory_space<vmem>>, vector<1x384xf32>
    %39 = vector.broadcast %38 : vector<1x384xf32> to vector<8x384xf32>
    %40 = arith.addf %37, %39 : vector<8x384xf32>
    %41 = vector.extract_strided_slice %40 {offsets = [0, 0], sizes = [8, 192], strides = [1, 1]} : vector<8x384xf32> to vector<8x192xf32>
    %42 = vector.extract_strided_slice %40 {offsets = [0, 192], sizes = [8, 192], strides = [1, 1]} : vector<8x384xf32> to vector<8x192xf32>
    %c0_29 = arith.constant 0 : index
    %c0_30 = arith.constant 0 : index
    %43 = vector.load %arg2[%c0_29, %c0_30] : memref<8x192xf32, #tpu.memory_space<vmem>>, vector<8x192xf32>
    %44 = arith.mulf %43, %42 : vector<8x192xf32>
    %45 = arith.addf %44, %41 : vector<8x192xf32>
    %c0_31 = arith.constant 0 : index
    %c0_32 = arith.constant 0 : index
    %46 = vector.load %arg15[%c0_31, %c0_32] : memref<8x192xf32, #tpu.memory_space<vmem>>, vector<8x192xf32>
    tpu.vector_store %arg15[%c0_31, %c0_32], %45 {strides = array<i32>} : memref<8x192xf32, #tpu.memory_space<vmem>>, vector<8x192xf32>,
    %c0_33 = arith.constant 0 : index
    %c0_34 = arith.constant 0 : index
    %47 = vector.load %arg3[%c0_33, %c0_34] : memref<8x384xf32, #tpu.memory_space<vmem>>, vector<8x384xf32>
    %48 = arith.addf %35, %47 : vector<8x384xf32>
    %49 = tpu.iota {dimensions = array<i32: 1>} : vector<8x384xi32>
    %cst_35 = arith.constant dense<0xFF800000> : vector<8xf32>
    %50 = vector.multi_reduction <maximumf>, %48, %cst_35 [1] : vector<8x384xf32> to vector<8xf32>
    %51 = vector.shape_cast %50 : vector<8xf32> to vector<8x1xf32>
    %52 = vector.broadcast %51 : vector<8x1xf32> to vector<8x384xf32>
    %53 = arith.cmpf oge, %48, %52 : vector<8x384xf32>
    %c384_i32 = arith.constant 384 : i32
    %54 = vector.broadcast %c384_i32 : i32 to vector<8x384xi32>
    %55 = arith.select %53, %49, %54 : vector<8x384xi1>, vector<8x384xi32>
    %cst_36 = arith.constant dense<2147483647> : vector<8xi32>
    %56 = vector.multi_reduction <minsi>, %55, %cst_36 [1] : vector<8x384xi32> to vector<8xi32>
    %57 = vector.shape_cast %56 : vector<8xi32> to vector<8x1xi32>
    %58 = vector.broadcast %57 : vector<8x1xi32> to vector<8x384xi32>
    %59 = arith.cmpi eq, %49, %58 : vector<8x384xi32>
    %60 = arith.extui %59 : vector<8x384xi1> to vector<8x384xi32>
    %61 = arith.sitofp %60 : vector<8x384xi32> to vector<8x384xf32>
    %c0_37 = arith.constant 0 : index
    %c0_38 = arith.constant 0 : index
    %62 = vector.load %arg16[%c0_37, %c0_38] : memref<8x384xf32, #tpu.memory_space<vmem>>, vector<8x384xf32>
    tpu.vector_store %arg16[%c0_37, %c0_38], %61 {strides = array<i32>} : memref<8x384xf32, #tpu.memory_space<vmem>>, vector<8x384xf32>,
    return
  }
  func.func @transform_0(%arg0: i32) -> (i32, i32) {
    %c0_i32 = arith.constant 0 : i32
    %c0_i32_0 = arith.constant 0 : i32
    return %arg0, %c0_i32 : i32, i32
  }
  func.func @transform_1(%arg0: i32) -> (i32, i32) {
    %c0_i32 = arith.constant 0 : i32
    %c0_i32_0 = arith.constant 0 : i32
    return %arg0, %c0_i32 : i32, i32
  }
  func.func @transform_2(%arg0: i32) -> (i32, i32) {
    %c0_i32 = arith.constant 0 : i32
    %c0_i32_0 = arith.constant 0 : i32
    return %arg0, %c0_i32 : i32, i32
  }
  func.func @transform_3(%arg0: i32) -> (i32, i32) {
    %c0_i32 = arith.constant 0 : i32
    %c0_i32_0 = arith.constant 0 : i32
    %c0_i32_1 = arith.constant 0 : i32
    return %c0_i32, %c0_i32_0 : i32, i32
  }
  func.func @transform_4(%arg0: i32) -> (i32, i32) {
    %c0_i32 = arith.constant 0 : i32
    %c0_i32_0 = arith.constant 0 : i32
    %c0_i32_1 = arith.constant 0 : i32
    return %c0_i32, %c0_i32_0 : i32, i32
  }
  func.func @transform_5(%arg0: i32) -> (i32, i32) {
    %c0_i32 = arith.constant 0 : i32
    %c0_i32_0 = arith.constant 0 : i32
    %c0_i32_1 = arith.constant 0 : i32
    return %c0_i32, %c0_i32_0 : i32, i32
  }
  func.func @transform_6(%arg0: i32) -> (i32, i32) {
    %c0_i32 = arith.constant 0 : i32
    %c0_i32_0 = arith.constant 0 : i32
    %c0_i32_1 = arith.constant 0 : i32
    return %c0_i32, %c0_i32_0 : i32, i32
  }
  func.func @transform_7(%arg0: i32) -> (i32, i32) {
    %c0_i32 = arith.constant 0 : i32
    %c0_i32_0 = arith.constant 0 : i32
    %c0_i32_1 = arith.constant 0 : i32
    return %c0_i32, %c0_i32_0 : i32, i32
  }
  func.func @transform_8(%arg0: i32) -> (i32, i32) {
    %c0_i32 = arith.constant 0 : i32
    %c0_i32_0 = arith.constant 0 : i32
    %c0_i32_1 = arith.constant 0 : i32
    return %c0_i32, %c0_i32_0 : i32, i32
  }
  func.func @transform_9(%arg0: i32) -> (i32, i32) {
    %c0_i32 = arith.constant 0 : i32
    %c0_i32_0 = arith.constant 0 : i32
    %c0_i32_1 = arith.constant 0 : i32
    return %c0_i32, %c0_i32_0 : i32, i32
  }
  func.func @transform_10(%arg0: i32) -> (i32, i32) {
    %c0_i32 = arith.constant 0 : i32
    %c0_i32_0 = arith.constant 0 : i32
    %c0_i32_1 = arith.constant 0 : i32
    return %c0_i32, %c0_i32_0 : i32, i32
  }
  func.func @transform_11(%arg0: i32) -> (i32, i32) {
    %c0_i32 = arith.constant 0 : i32
    %c0_i32_0 = arith.constant 0 : i32
    %c0_i32_1 = arith.constant 0 : i32
    return %c0_i32, %c0_i32_0 : i32, i32
  }
  func.func @transform_12(%arg0: i32) -> (i32, i32) {
    %c0_i32 = arith.constant 0 : i32
    %c0_i32_0 = arith.constant 0 : i32
    %c0_i32_1 = arith.constant 0 : i32
    return %c0_i32, %c0_i32_0 : i32, i32
  }
  func.func @transform_13(%arg0: i32) -> (i32, i32) {
    %c0_i32 = arith.constant 0 : i32
    %c0_i32_0 = arith.constant 0 : i32
    %c0_i32_1 = arith.constant 0 : i32
    return %c0_i32, %c0_i32_0 : i32, i32
  }
  func.func @transform_14(%arg0: i32) -> (i32, i32) {
    %c0_i32 = arith.constant 0 : i32
    %c0_i32_0 = arith.constant 0 : i32
    return %arg0, %c0_i32 : i32, i32
  }
  func.func @transform_15(%arg0: i32) -> (i32, i32) {
    %c0_i32 = arith.constant 0 : i32
    %c0_i32_0 = arith.constant 0 : i32
    return %arg0, %c0_i32 : i32, i32
  }
}

</mosaic_0001>

<llo_original>
// kernel: tpu_custom_call.1
$region0: #{tpu_custom_call.1}
  #allocation0 [shape = 'u32[]', space=smem, size = 0x4, offset = 0x4, fixed_abs, tag = 'smem constant byte address 0x4 - core index']
  #allocation1 [shape = 'u32[144,128]{1,0:T(1,128)}', space=vmem, size = 0x12000, scoped, tag = 'internal scratch']
  %s0 = inlined_call_operand.vmem [shape: f32[8,64], index: 0, kind: input, shape index: {}]
  %s1 = inlined_call_operand.vmem [shape: f32[8,192], index: 1, kind: input, shape index: {}]
  %s2 = inlined_call_operand.vmem [shape: f32[8,384], index: 2, kind: input, shape index: {}]
  %s3 = inlined_call_operand.vmem [shape: f32[64,256], index: 3, kind: input, shape index: {}]
  %s4 = inlined_call_operand.vmem [shape: f32[1,256], index: 4, kind: input, shape index: {}]
  %s5 = inlined_call_operand.vmem [shape: f32[1,256], index: 5, kind: input, shape index: {}]
  %s6 = inlined_call_operand.vmem [shape: f32[256,320], index: 6, kind: input, shape index: {}]
  %s7 = inlined_call_operand.vmem [shape: f32[1,320], index: 7, kind: input, shape index: {}]
  %s8 = inlined_call_operand.vmem [shape: f32[1,320], index: 8, kind: input, shape index: {}]
  %s9 = inlined_call_operand.hbm [shape: f32[320,768], index: 9, kind: input, shape index: {}]
  %s10 = inlined_call_operand.vmem [shape: f32[1,768], index: 10, kind: input, shape index: {}]
  %s11 = inlined_call_operand.vmem [shape: f32[1,768], index: 11, kind: input, shape index: {}]
  %s12 = inlined_call_operand.vmem [shape: f32[384,384], index: 12, kind: input, shape index: {}]
  %s13 = inlined_call_operand.vmem [shape: f32[1,384], index: 13, kind: input, shape index: {}]
  %s14 = inlined_call_operand.hbm [shape: f32[8,192], index: 14, kind: output, shape index: {0}]
  %s15 = inlined_call_operand.hbm [shape: f32[8,384], index: 15, kind: output, shape index: {1}]
  %16 = xla_tuple %s14, %s15
  %s17 = sld [smem:[#allocation0]]
  $region78: #{tpu_custom_call.1} parent=0
    _
  %s19 = ssub.s32 1, %s17
  %s20 = scalar_select 0, %s19, %s17
  $region1: #{tpu_custom_call.1} parent=0
    #allocation2 [shape = 'u8[983040]{0}', space=vmem, size = 0xf0000, scoped, tag = 'input window, operand 9, single buffered']
    #allocation3 [shape = 's32[1]{0}', space=sflag, size = 0x4, scoped, tag = 'scoped memory for tpu_custom_call.1']
    #allocation4 [shape = 's32[1]{0}', space=sflag, size = 0x4, scoped, tag = 'scoped memory for tpu_custom_call.1']
    #allocation5 [shape = 'u8[8192]{0}', space=vmem, size = 0x2000, scoped, tag = 'output window, operand 0, single buffered']
    #allocation6 [shape = 'u8[12288]{0}', space=vmem, size = 0x3000, scoped, tag = 'output window, operand 1, single buffered']
    #allocation7 [shape = 's32[1]{0}', space=sflag, size = 0x4, scoped, tag = 'scoped memory for tpu_custom_call.1']
    %21 = vsyncpa [#allocation3], 0
    %22 = vsyncpa [#allocation4], 0
    %23 = vsyncpa [#allocation7], 0
    // Predicated region
    $region2: #{tpu_custom_call.1} parent=1 // pred_check
      _
    $region3: #{tpu_custom_call.1} parent=1 // pred_check_branch
      %25 = sbr.rel (0) target = $region5
    $region4: #{tpu_custom_call.1} parent=1 // pred_region
      _
    $region5: #{tpu_custom_call.1} parent=1 // pred_fallthru
      _
    // Predicated region
    $region6: #{tpu_custom_call.1} parent=1 // pred_check
      _
    $region7: #{tpu_custom_call.1} parent=1 // pred_check_branch
      %27 = sbr.rel (0) target = $region9
    $region8: #{tpu_custom_call.1} parent=1 // pred_region
      _
    $region9: #{tpu_custom_call.1} parent=1 // pred_fallthru
      _
    // Predicated region
    $region10: #{tpu_custom_call.1} parent=1 // pred_check
      _
    $region11: #{tpu_custom_call.1} parent=1 // pred_check_branch
      %29 = sbr.rel (0) target = $region13
    $region12: #{tpu_custom_call.1} parent=1 // pred_region
      _
    $region13: #{tpu_custom_call.1} parent=1 // pred_fallthru
      _
    // Predicated region
    $region14: #{tpu_custom_call.1} parent=1 // pred_check
      _
    $region15: #{tpu_custom_call.1} parent=1 // pred_check_branch
      %31 = sbr.rel (0) target = $region17
    $region16: #{tpu_custom_call.1} parent=1 // pred_region
      _
    $region17: #{tpu_custom_call.1} parent=1 // pred_fallthru
      _
    // Predicated region
    $region18: #{tpu_custom_call.1} parent=1 // pred_check
      _
    $region19: #{tpu_custom_call.1} parent=1 // pred_check_branch
      %33 = sbr.rel (0) target = $region21
    $region20: #{tpu_custom_call.1} parent=1 // pred_region
      _
    $region21: #{tpu_custom_call.1} parent=1 // pred_fallthru
      _
    // Predicated region
    $region22: #{tpu_custom_call.1} parent=1 // pred_check
      _
    $region23: #{tpu_custom_call.1} parent=1 // pred_check_branch
      %35 = sbr.rel (0) target = $region25
    $region24: #{tpu_custom_call.1} parent=1 // pred_region
      _
    $region25: #{tpu_custom_call.1} parent=1 // pred_fallthru
      _
    // Predicated region
    $region26: #{tpu_custom_call.1} parent=1 // pred_check
      _
    $region27: #{tpu_custom_call.1} parent=1 // pred_check_branch
      %37 = sbr.rel (0) target = $region29
    $region28: #{tpu_custom_call.1} parent=1 // pred_region
      _
    $region29: #{tpu_custom_call.1} parent=1 // pred_fallthru
      _
    // Predicated region
    $region30: #{tpu_custom_call.1} parent=1 // pred_check
      _
    $region31: #{tpu_custom_call.1} parent=1 // pred_check_branch
      %39 = sbr.rel (0) target = $region33
    $region32: #{tpu_custom_call.1} parent=1 // pred_region
      _
    $region33: #{tpu_custom_call.1} parent=1 // pred_fallthru
      _
    // Predicated region
    $region34: #{tpu_custom_call.1} parent=1 // pred_check
      _
    $region35: #{tpu_custom_call.1} parent=1 // pred_check_branch
      %41 = sbr.rel (0) target = $region37
    $region36: #{tpu_custom_call.1} parent=1 // pred_region
      _
    $region37: #{tpu_custom_call.1} parent=1 // pred_fallthru
      _
    // Predicated region
    $region38: #{tpu_custom_call.1} parent=1 // pred_check
      _
    $region39: #{tpu_custom_call.1} parent=1 // pred_check_branch
      %43 = sbr.rel (0) target = $region41
    $region40: #{tpu_custom_call.1} parent=1 // pred_region
      %s45 = ssub.s32 30720, 30720
      %46 = vsyncadd [#allocation3], %s45
      %s47 = sshll.u32 [#allocation2], 4
      %s48 = int_to_ptr.vmem [resolvable:$true] %s47
      %53 = dma.hbm_to_vmem [thread:$0]  %s9, 30720, %s48, [#allocation3], 768, 768, 48
    $region41: #{tpu_custom_call.1} parent=1 // pred_fallthru
      _
    // Predicated region
    $region42: #{tpu_custom_call.1} parent=1 // pred_check
      _
    $region43: #{tpu_custom_call.1} parent=1 // pred_check_branch
      %55 = sbr.rel (0) target = $region45
    $region44: #{tpu_custom_call.1} parent=1 // pred_region
      _
    $region45: #{tpu_custom_call.1} parent=1 // pred_fallthru
      _
    // Predicated region
    $region46: #{tpu_custom_call.1} parent=1 // pred_check
      _
    $region47: #{tpu_custom_call.1} parent=1 // pred_check_branch
      %57 = sbr.rel (0) target = $region49
    $region48: #{tpu_custom_call.1} parent=1 // pred_region
      _
    $region49: #{tpu_custom_call.1} parent=1 // pred_fallthru
      _
    // Predicated region
    $region50: #{tpu_custom_call.1} parent=1 // pred_check
      _
    $region51: #{tpu_custom_call.1} parent=1 // pred_check_branch
      %59 = sbr.rel (0) target = $region53
    $region52: #{tpu_custom_call.1} parent=1 // pred_region
      _
    $region53: #{tpu_custom_call.1} parent=1 // pred_fallthru
      _
    // Predicated region
    $region54: #{tpu_custom_call.1} parent=1 // pred_check
      _
    $region55: #{tpu_custom_call.1} parent=1 // pred_check_branch
      %61 = sbr.rel (0) target = $region57
    $region56: #{tpu_custom_call.1} parent=1 // pred_region
      _
    $region57: #{tpu_custom_call.1} parent=1 // pred_fallthru
      _
    // Predicated region
    $region58: #{tpu_custom_call.1} parent=1 // pred_check
      _
    $region59: #{tpu_custom_call.1} parent=1 // pred_check_branch
      %63 = sbr.rel (0) target = $region61
    $region60: #{tpu_custom_call.1} parent=1 // pred_region
      %64 = dma.done [#allocation3], 30720
    $region61: #{tpu_custom_call.1} parent=1 // pred_fallthru
      _
    %v65 = vld [vmem:[%s0] sm:$0xff]
    %v66 = vld [vmem:[%s3] sm:$0xff]
    %v67 = vld [vmem:[%s3 + $0x8] sm:$0xff]
    %v68 = vld [vmem:[%s3 + $0x10] sm:$0xff]
    %v69 = vld [vmem:[%s3 + $0x18] sm:$0xff]
    %v70 = vld [vmem:[%s3 + $0x20] sm:$0xff]
    %v71 = vld [vmem:[%s3 + $0x28] sm:$0xff]
    %v72 = vld [vmem:[%s3 + $0x30] sm:$0xff]
    %v73 = vld [vmem:[%s3 + $0x38] sm:$0xff]
    %v74 = vld [vmem:[%s3 + $0x40] sm:$0xff]
    %v75 = vld [vmem:[%s3 + $0x48] sm:$0xff]
    %v76 = vld [vmem:[%s3 + $0x50] sm:$0xff]
    %v77 = vld [vmem:[%s3 + $0x58] sm:$0xff]
    %v78 = vld [vmem:[%s3 + $0x60] sm:$0xff]
    %v79 = vld [vmem:[%s3 + $0x68] sm:$0xff]
    %v80 = vld [vmem:[%s3 + $0x70] sm:$0xff]
    %v81 = vld [vmem:[%s3 + $0x78] sm:$0xff]
    %v82 = vld [vmem:[%s4] sm:$0x3]
    %v84 = vlaneseq
    %v85 = vshrl.u32 %v84, 7
    %v86 = vsub.s32 0, %v85
    %v87 = vrot.slane %v82, %v86
    %v88 = vlaneseq
    %v89 = vshrl.u32 %v88, 7
    %v90 = vsub.s32 1, %v89
    %v91 = vrot.slane %v82, %v90
    %vm94 = vcmask 523264
    %v96 = vsel %vm94, %v65, 0
    %98 = vmatprep.subr.mxu0 %v67
    %99 = vmatpush1.msra.mxu0 %v66
    %100 = vmatprep.subr.mxu0 %v69
    %101 = vmatpush1.msra.mxu0 %v68
    %102 = vmatprep.subr.mxu0 %v71
    %103 = vmatpush1.msra.mxu0 %v70
    %104 = vmatprep.subr.mxu0 %v73
    %105 = vmatpush1.msra.mxu0 %v72
    %106 = vmatprep.subr.mxu0 %v75
    %107 = vmatpush1.msra.mxu0 %v74
    %108 = vmatprep.subr.mxu0 %v77
    %109 = vmatpush1.msra.mxu0 %v76
    %110 = vmatprep.subr.mxu0 %v79
    %111 = vmatpush1.msra.mxu0 %v78
    %112 = vmatprep.subr.mxu0 %v81
    %113 = vmatpush1.msra.mxu0 %v80
    %114 = vmatprep.subr.mxu0 0.0
    %115 = vmatpush1.msra.mxu0 0.0
    %116 = vmatprep.subr.mxu0 0.0
    %117 = vmatpush1.msra.mxu0 0.0
    %118 = vmatprep.subr.mxu0 0.0
    %119 = vmatpush1.msra.mxu0 0.0
    %120 = vmatprep.subr.mxu0 0.0
    %121 = vmatpush1.msra.mxu0 0.0
    %122 = vmatprep.subr.mxu0 0.0
    %123 = vmatpush1.msra.mxu0 0.0
    %124 = vmatprep.subr.mxu0 0.0
    %125 = vmatpush1.msra.mxu0 0.0
    %126 = vmatprep.subr.mxu0 0.0
    %127 = vmatpush1.msra.mxu0 0.0
    %128 = vmatprep.subr.mxu0 0.0
    %129 = vmatpush1.msra.mxu0 0.0
    %130 = vmatprep.subr.mxu0 0.0
    %131 = vmatpush1.msra.mxu0 0.0
    %132 = vmatprep.subr.mxu0 0.0
    %133 = vmatpush1.msra.mxu0 0.0
    %134 = vmatprep.subr.mxu0 0.0
    %135 = vmatpush1.msra.mxu0 0.0
    %136 = vmatprep.subr.mxu0 0.0
    %137 = vmatpush1.msra.mxu0 0.0
    %138 = vmatprep.subr.mxu0 0.0
    %139 = vmatpush1.msra.mxu0 0.0
    %140 = vmatprep.subr.mxu0 0.0
    %141 = vmatpush1.msra.mxu0 0.0
    %142 = vmatprep.subr.mxu0 0.0
    %143 = vmatpush1.msra.mxu0 0.0
    %144 = vmatprep.subr.mxu0 0.0
    %145 = vmatpush1.msra.mxu0 0.0
    %146 = vmatprep.subr.mxu0 0.0
    %147 = vmatpush1.msra.mxu0 0.0
    %148 = vmatprep.subr.mxu0 0.0
    %149 = vmatpush1.msra.mxu0 0.0
    %150 = vmatprep.subr.mxu0 0.0
    %151 = vmatpush1.msra.mxu0 0.0
    %152 = vmatprep.subr.mxu0 0.0
    %153 = vmatpush1.msra.mxu0 0.0
    %154 = vmatprep.subr.mxu0 0.0
    %155 = vmatpush1.msra.mxu0 0.0
    %156 = vmatprep.subr.mxu0 0.0
    %157 = vmatpush1.msra.mxu0 0.0
    %158 = vmatprep.subr.mxu0 0.0
    %159 = vmatpush1.msra.mxu0 0.0
    %160 = vmatprep.subr.mxu0 0.0
    %161 = vmatpush1.msra.mxu0 0.0
    %162 = vmatprep.mubr.f32.mxu0 0.0
    %163 = vmatmul.mubr.f32.gmra.mrb[0].mxu0 %v96
    %v164 = vpop.f32.mrb[0].mxu0
    %v165 = vadd.f32 %v87, %v164
    %v166 = vpop.f32.mrb[0].mxu0
    %v167 = vadd.f32 %v91, %v166
    %168 = vdwg.mxu0
    %v169 = vld [vmem:[%s5] sm:$0x3]
    %vm170 = vcmp.ge.f32.partialorder %v165, 0.0
    %vm171 = vcmp.ge.f32.partialorder %v167, 0.0
    %v173 = vlaneseq
    %v174 = vshrl.u32 %v173, 7
    %v175 = vsub.s32 0, %v174
    %v176 = vrot.slane %v169, %v175
    %v177 = vlaneseq
    %v178 = vshrl.u32 %v177, 7
    %v179 = vsub.s32 1, %v178
    %v180 = vrot.slane %v169, %v179
    %v183 = vmul.f32 %v176, %v165
    %v184 = vmul.f32 %v180, %v167
    %v185 = vsel %vm170, %v165, %v183
    %v186 = vsel %vm171, %v167, %v184
    %v187 = vld [vmem:[%s6] sm:$0xff]
    %v188 = vld [vmem:[%s6 + $0x8] sm:$0xff]
    %v189 = vld [vmem:[%s6 + $0x10] sm:$0xff]
    %v190 = vld [vmem:[%s6 + $0x18] sm:$0xff]
    %v191 = vld [vmem:[%s6 + $0x20] sm:$0xff]
    %v192 = vld [vmem:[%s6 + $0x28] sm:$0xff]
    %v193 = vld [vmem:[%s6 + $0x30] sm:$0xff]
    %v194 = vld [vmem:[%s6 + $0x38] sm:$0xff]
    %v195 = vld [vmem:[%s6 + $0x40] sm:$0xff]
    %v196 = vld [vmem:[%s6 + $0x48] sm:$0xff]
    %v197 = vld [vmem:[%s6 + $0x50] sm:$0xff]
    %v198 = vld [vmem:[%s6 + $0x58] sm:$0xff]
    %v199 = vld [vmem:[%s6 + $0x60] sm:$0xff]
    %v200 = vld [vmem:[%s6 + $0x68] sm:$0xff]
    %v201 = vld [vmem:[%s6 + $0x70] sm:$0xff]
    %v202 = vld [vmem:[%s6 + $0x78] sm:$0xff]
    %v203 = vld [vmem:[%s6 + $0x80] sm:$0xff]
    %v204 = vld [vmem:[%s6 + $0x88] sm:$0xff]
    %v205 = vld [vmem:[%s6 + $0x90] sm:$0xff]
    %v206 = vld [vmem:[%s6 + $0x98] sm:$0xff]
    %v207 = vld [vmem:[%s6 + $0xa0] sm:$0xff]
    %v208 = vld [vmem:[%s6 + $0xa8] sm:$0xff]
    %v209 = vld [vmem:[%s6 + $0xb0] sm:$0xff]
    %v210 = vld [vmem:[%s6 + $0xb8] sm:$0xff]
    %v211 = vld [vmem:[%s6 + $0xc0] sm:$0xff]
    %v212 = vld [vmem:[%s6 + $0xc8] sm:$0xff]
    %v213 = vld [vmem:[%s6 + $0xd0] sm:$0xff]
    %v214 = vld [vmem:[%s6 + $0xd8] sm:$0xff]
    %v215 = vld [vmem:[%s6 + $0xe0] sm:$0xff]
    %v216 = vld [vmem:[%s6 + $0xe8] sm:$0xff]
    %v217 = vld [vmem:[%s6 + $0xf0] sm:$0xff]
    %v218 = vld [vmem:[%s6 + $0xf8] sm:$0xff]
    %v219 = vld [vmem:[%s6 + $0x100] sm:$0xff]
    %v220 = vld [vmem:[%s6 + $0x108] sm:$0xff]
    %v221 = vld [vmem:[%s6 + $0x110] sm:$0xff]
    %v222 = vld [vmem:[%s6 + $0x118] sm:$0xff]
    %v223 = vld [vmem:[%s6 + $0x120] sm:$0xff]
    %v224 = vld [vmem:[%s6 + $0x128] sm:$0xff]
    %v225 = vld [vmem:[%s6 + $0x130] sm:$0xff]
    %v226 = vld [vmem:[%s6 + $0x138] sm:$0xff]
    %v227 = vld [vmem:[%s6 + $0x140] sm:$0xff]
    %v228 = vld [vmem:[%s6 + $0x148] sm:$0xff]
    %v229 = vld [vmem:[%s6 + $0x150] sm:$0xff]
    %v230 = vld [vmem:[%s6 + $0x158] sm:$0xff]
    %v231 = vld [vmem:[%s6 + $0x160] sm:$0xff]
    %v232 = vld [vmem:[%s6 + $0x168] sm:$0xff]
    %v233 = vld [vmem:[%s6 + $0x170] sm:$0xff]
    %v234 = vld [vmem:[%s6 + $0x178] sm:$0xff]
    %v235 = vld [vmem:[%s6 + $0x180] sm:$0xff]
    %v236 = vld [vmem:[%s6 + $0x188] sm:$0xff]
    %v237 = vld [vmem:[%s6 + $0x190] sm:$0xff]
    %v238 = vld [vmem:[%s6 + $0x198] sm:$0xff]
    %v239 = vld [vmem:[%s6 + $0x1a0] sm:$0xff]
    %v240 = vld [vmem:[%s6 + $0x1a8] sm:$0xff]
    %v241 = vld [vmem:[%s6 + $0x1b0] sm:$0xff]
    %v242 = vld [vmem:[%s6 + $0x1b8] sm:$0xff]
    %v243 = vld [vmem:[%s6 + $0x1c0] sm:$0xff]
    %v244 = vld [vmem:[%s6 + $0x1c8] sm:$0xff]
    %v245 = vld [vmem:[%s6 + $0x1d0] sm:$0xff]
    %v246 = vld [vmem:[%s6 + $0x1d8] sm:$0xff]
    %v247 = vld [vmem:[%s6 + $0x1e0] sm:$0xff]
    %v248 = vld [vmem:[%s6 + $0x1e8] sm:$0xff]
    %v249 = vld [vmem:[%s6 + $0x1f0] sm:$0xff]
    %v250 = vld [vmem:[%s6 + $0x1f8] sm:$0xff]
    %v251 = vld [vmem:[%s6 + $0x200] sm:$0xff]
    %v252 = vld [vmem:[%s6 + $0x208] sm:$0xff]
    %v253 = vld [vmem:[%s6 + $0x210] sm:$0xff]
    %v254 = vld [vmem:[%s6 + $0x218] sm:$0xff]
    %v255 = vld [vmem:[%s6 + $0x220] sm:$0xff]
    %v256 = vld [vmem:[%s6 + $0x228] sm:$0xff]
    %v257 = vld [vmem:[%s6 + $0x230] sm:$0xff]
    %v258 = vld [vmem:[%s6 + $0x238] sm:$0xff]
    %v259 = vld [vmem:[%s6 + $0x240] sm:$0xff]
    %v260 = vld [vmem:[%s6 + $0x248] sm:$0xff]
    %v261 = vld [vmem:[%s6 + $0x250] sm:$0xff]
    %v262 = vld [vmem:[%s6 + $0x258] sm:$0xff]
    %v263 = vld [vmem:[%s6 + $0x260] sm:$0xff]
    %v264 = vld [vmem:[%s6 + $0x268] sm:$0xff]
    %v265 = vld [vmem:[%s6 + $0x270] sm:$0xff]
    %v266 = vld [vmem:[%s6 + $0x278] sm:$0xff]
    %v267 = vld [vmem:[%s6 + $0x280] sm:$0xff]
    %v268 = vld [vmem:[%s6 + $0x288] sm:$0xff]
    %v269 = vld [vmem:[%s6 + $0x290] sm:$0xff]
    %v270 = vld [vmem:[%s6 + $0x298] sm:$0xff]
    %v271 = vld [vmem:[%s6 + $0x2a0] sm:$0xff]
    %v272 = vld [vmem:[%s6 + $0x2a8] sm:$0xff]
    %v273 = vld [vmem:[%s6 + $0x2b0] sm:$0xff]
    %v274 = vld [vmem:[%s6 + $0x2b8] sm:$0xff]
    %v275 = vld [vmem:[%s6 + $0x2c0] sm:$0xff]
    %v276 = vld [vmem:[%s6 + $0x2c8] sm:$0xff]
    %v277 = vld [vmem:[%s6 + $0x2d0] sm:$0xff]
    %v278 = vld [vmem:[%s6 + $0x2d8] sm:$0xff]
    %v279 = vld [vmem:[%s6 + $0x2e0] sm:$0xff]
    %v280 = vld [vmem:[%s6 + $0x2e8] sm:$0xff]
    %v281 = vld [vmem:[%s6 + $0x2f0] sm:$0xff]
    %v282 = vld [vmem:[%s6 + $0x2f8] sm:$0xff]
    %v283 = vld [vmem:[%s7] sm:$0x7]
    %v285 = vlaneseq
    %v286 = vshrl.u32 %v285, 7
    %v287 = vsub.s32 0, %v286
    %v288 = vrot.slane %v283, %v287
    %v289 = vlaneseq
    %v290 = vshrl.u32 %v289, 7
    %v291 = vsub.s32 1, %v290
    %v292 = vrot.slane %v283, %v291
    %v293 = vlaneseq
    %v294 = vshrl.u32 %v293, 7
    %v295 = vsub.s32 2, %v294
    %v296 = vrot.slane %v283, %v295
    %300 = vmatprep.subr.mxu0 %v188
    %301 = vmatpush1.msra.mxu0 %v187
    %302 = vmatprep.subr.mxu0 %v191
    %303 = vmatpush1.msra.mxu0 %v190
    %304 = vmatprep.subr.mxu0 %v194
    %305 = vmatpush1.msra.mxu0 %v193
    %306 = vmatprep.subr.mxu0 %v197
    %307 = vmatpush1.msra.mxu0 %v196
    %308 = vmatprep.subr.mxu0 %v200
    %309 = vmatpush1.msra.mxu0 %v199
    %310 = vmatprep.subr.mxu0 %v203
    %311 = vmatpush1.msra.mxu0 %v202
    %312 = vmatprep.subr.mxu0 %v206
    %313 = vmatpush1.msra.mxu0 %v205
    %314 = vmatprep.subr.mxu0 %v209
    %315 = vmatpush1.msra.mxu0 %v208
    %316 = vmatprep.subr.mxu0 %v212
    %317 = vmatpush1.msra.mxu0 %v211
    %318 = vmatprep.subr.mxu0 %v215
    %319 = vmatpush1.msra.mxu0 %v214
    %320 = vmatprep.subr.mxu0 %v218
    %321 = vmatpush1.msra.mxu0 %v217
    %322 = vmatprep.subr.mxu0 %v221
    %323 = vmatpush1.msra.mxu0 %v220
    %324 = vmatprep.subr.mxu0 %v224
    %325 = vmatpush1.msra.mxu0 %v223
    %326 = vmatprep.subr.mxu0 %v227
    %327 = vmatpush1.msra.mxu0 %v226
    %328 = vmatprep.subr.mxu0 %v230
    %329 = vmatpush1.msra.mxu0 %v229
    %330 = vmatprep.subr.mxu0 %v233
    %331 = vmatpush1.msra.mxu0 %v232
    %332 = vmatprep.subr.mxu0 %v236
    %333 = vmatpush1.msra.mxu0 %v235
    %334 = vmatprep.subr.mxu0 %v239
    %335 = vmatpush1.msra.mxu0 %v238
    %336 = vmatprep.subr.mxu0 %v242
    %337 = vmatpush1.msra.mxu0 %v241
    %338 = vmatprep.subr.mxu0 %v245
    %339 = vmatpush1.msra.mxu0 %v244
    %340 = vmatprep.subr.mxu0 %v248
    %341 = vmatpush1.msra.mxu0 %v247
    %342 = vmatprep.subr.mxu0 %v251
    %343 = vmatpush1.msra.mxu0 %v250
    %344 = vmatprep.subr.mxu0 %v254
    %345 = vmatpush1.msra.mxu0 %v253
    %346 = vmatprep.subr.mxu0 %v257
    %347 = vmatpush1.msra.mxu0 %v256
    %348 = vmatprep.subr.mxu0 %v260
    %349 = vmatpush1.msra.mxu0 %v259
    %350 = vmatprep.subr.mxu0 %v263
    %351 = vmatpush1.msra.mxu0 %v262
    %352 = vmatprep.subr.mxu0 %v266
    %353 = vmatpush1.msra.mxu0 %v265
    %354 = vmatprep.subr.mxu0 %v269
    %355 = vmatpush1.msra.mxu0 %v268
    %356 = vmatprep.subr.mxu0 %v272
    %357 = vmatpush1.msra.mxu0 %v271
    %358 = vmatprep.subr.mxu0 %v275
    %359 = vmatpush1.msra.mxu0 %v274
    %360 = vmatprep.subr.mxu0 %v278
    %361 = vmatpush1.msra.mxu0 %v277
    %362 = vmatprep.subr.mxu0 %v281
    %363 = vmatpush1.msra.mxu0 %v280
    %364 = vmatprep.mubr.f32.mxu0 %v186
    %365 = vmatmul.mubr.f32.gmra.mrb[0].mxu0 %v185
    %v366 = vpop.f32.mrb[0].mxu0
    %v367 = vadd.f32 %v288, %v366
    %v368 = vpop.f32.mrb[0].mxu0
    %v369 = vadd.f32 %v292, %v368
    %370 = vdwg.mxu0
    %371 = vmatprep.subr.mxu0 0.0
    %372 = vmatpush1.msra.mxu0 %v189
    %373 = vmatprep.subr.mxu0 0.0
    %374 = vmatpush1.msra.mxu0 %v192
    %375 = vmatprep.subr.mxu0 0.0
    %376 = vmatpush1.msra.mxu0 %v195
    %377 = vmatprep.subr.mxu0 0.0
    %378 = vmatpush1.msra.mxu0 %v198
    %379 = vmatprep.subr.mxu0 0.0
    %380 = vmatpush1.msra.mxu0 %v201
    %381 = vmatprep.subr.mxu0 0.0
    %382 = vmatpush1.msra.mxu0 %v204
    %383 = vmatprep.subr.mxu0 0.0
    %384 = vmatpush1.msra.mxu0 %v207
    %385 = vmatprep.subr.mxu0 0.0
    %386 = vmatpush1.msra.mxu0 %v210
    %387 = vmatprep.subr.mxu0 0.0
    %388 = vmatpush1.msra.mxu0 %v213
    %389 = vmatprep.subr.mxu0 0.0
    %390 = vmatpush1.msra.mxu0 %v216
    %391 = vmatprep.subr.mxu0 0.0
    %392 = vmatpush1.msra.mxu0 %v219
    %393 = vmatprep.subr.mxu0 0.0
    %394 = vmatpush1.msra.mxu0 %v222
    %395 = vmatprep.subr.mxu0 0.0
    %396 = vmatpush1.msra.mxu0 %v225
    %397 = vmatprep.subr.mxu0 0.0
    %398 = vmatpush1.msra.mxu0 %v228
    %399 = vmatprep.subr.mxu0 0.0
    %400 = vmatpush1.msra.mxu0 %v231
    %401 = vmatprep.subr.mxu0 0.0
    %402 = vmatpush1.msra.mxu0 %v234
    %403 = vmatprep.subr.mxu0 0.0
    %404 = vmatpush1.msra.mxu0 %v237
    %405 = vmatprep.subr.mxu0 0.0
    %406 = vmatpush1.msra.mxu0 %v240
    %407 = vmatprep.subr.mxu0 0.0
    %408 = vmatpush1.msra.mxu0 %v243
    %409 = vmatprep.subr.mxu0 0.0
    %410 = vmatpush1.msra.mxu0 %v246
    %411 = vmatprep.subr.mxu0 0.0
    %412 = vmatpush1.msra.mxu0 %v249
    %413 = vmatprep.subr.mxu0 0.0
    %414 = vmatpush1.msra.mxu0 %v252
    %415 = vmatprep.subr.mxu0 0.0
    %416 = vmatpush1.msra.mxu0 %v255
    %417 = vmatprep.subr.mxu0 0.0
    %418 = vmatpush1.msra.mxu0 %v258
    %419 = vmatprep.subr.mxu0 0.0
    %420 = vmatpush1.msra.mxu0 %v261
    %421 = vmatprep.subr.mxu0 0.0
    %422 = vmatpush1.msra.mxu0 %v264
    %423 = vmatprep.subr.mxu0 0.0
    %424 = vmatpush1.msra.mxu0 %v267
    %425 = vmatprep.subr.mxu0 0.0
    %426 = vmatpush1.msra.mxu0 %v270
    %427 = vmatprep.subr.mxu0 0.0
    %428 = vmatpush1.msra.mxu0 %v273
    %429 = vmatprep.subr.mxu0 0.0
    %430 = vmatpush1.msra.mxu0 %v276
    %431 = vmatprep.subr.mxu0 0.0
    %432 = vmatpush1.msra.mxu0 %v279
    %433 = vmatprep.subr.mxu0 0.0
    %434 = vmatpush1.msra.mxu0 %v282
    %435 = vmatprep.mubr.f32.mxu0 %v186
    %436 = vmatmul.mubr.f32.gmra.mrb[0].mxu0 %v185
    %v437 = vpop.f32.mrb[0].mxu0
    %v438 = vadd.f32 %v296, %v437
    %v439 = vpop.f32.mrb[0].mxu0
    %440 = vdwg.mxu0
    %v441 = vld [vmem:[%s8] sm:$0x7]
    %vm442 = vcmp.ge.f32.partialorder %v367, 0.0
    %vm443 = vcmp.ge.f32.partialorder %v369, 0.0
    %vm444 = vcmp.ge.f32.partialorder %v438, 0.0
    %v446 = vlaneseq
    %v447 = vshrl.u32 %v446, 7
    %v448 = vsub.s32 0, %v447
    %v449 = vrot.slane %v441, %v448
    %v450 = vlaneseq
    %v451 = vshrl.u32 %v450, 7
    %v452 = vsub.s32 1, %v451
    %v453 = vrot.slane %v441, %v452
    %v454 = vlaneseq
    %v455 = vshrl.u32 %v454, 7
    %v456 = vsub.s32 2, %v455
    %v457 = vrot.slane %v441, %v456
    %v461 = vmul.f32 %v449, %v367
    %v462 = vmul.f32 %v453, %v369
    %v463 = vmul.f32 %v457, %v438
    %v464 = vsel %vm442, %v367, %v461
    %v465 = vsel %vm443, %v369, %v462
    %v466 = vsel %vm444, %v438, %v463
    %v467 = vld [vmem:[#allocation2] sm:$0xff]
    %v468 = vld [vmem:[#allocation2 + $0x8] sm:$0xff]
    %v469 = vld [vmem:[#allocation2 + $0x10] sm:$0xff]
    %v470 = vld [vmem:[#allocation2 + $0x18] sm:$0xff]
    %v471 = vld [vmem:[#allocation2 + $0x20] sm:$0xff]
    %v472 = vld [vmem:[#allocation2 + $0x28] sm:$0xff]
    %v473 = vld [vmem:[#allocation2 + $0x30] sm:$0xff]
    %v474 = vld [vmem:[#allocation2 + $0x38] sm:$0xff]
    %v475 = vld [vmem:[#allocation2 + $0x40] sm:$0xff]
    %v476 = vld [vmem:[#allocation2 + $0x48] sm:$0xff]
    %v477 = vld [vmem:[#allocation2 + $0x50] sm:$0xff]
    %v478 = vld [vmem:[#allocation2 + $0x58] sm:$0xff]
    %v479 = vld [vmem:[#allocation2 + $0x60] sm:$0xff]
    %v480 = vld [vmem:[#allocation2 + $0x68] sm:$0xff]
    %v481 = vld [vmem:[#allocation2 + $0x70] sm:$0xff]
    %v482 = vld [vmem:[#allocation2 + $0x78] sm:$0xff]
    %v483 = vld [vmem:[#allocation2 + $0x80] sm:$0xff]
    %v484 = vld [vmem:[#allocation2 + $0x88] sm:$0xff]
    %v485 = vld [vmem:[#allocation2 + $0x90] sm:$0xff]
    %v486 = vld [vmem:[#allocation2 + $0x98] sm:$0xff]
    %v487 = vld [vmem:[#allocation2 + $0xa0] sm:$0xff]
    %v488 = vld [vmem:[#allocation2 + $0xa8] sm:$0xff]
    %v489 = vld [vmem:[#allocation2 + $0xb0] sm:$0xff]
    %v490 = vld [vmem:[#allocation2 + $0xb8] sm:$0xff]
    %v491 = vld [vmem:[#allocation2 + $0xc0] sm:$0xff]
    %v492 = vld [vmem:[#allocation2 + $0xc8] sm:$0xff]
    %v493 = vld [vmem:[#allocation2 + $0xd0] sm:$0xff]
    %v494 = vld [vmem:[#allocation2 + $0xd8] sm:$0xff]
    %v495 = vld [vmem:[#allocation2 + $0xe0] sm:$0xff]
    %v496 = vld [vmem:[#allocation2 + $0xe8] sm:$0xff]
    %v497 = vld [vmem:[#allocation2 + $0xf0] sm:$0xff]
    %v498 = vld [vmem:[#allocation2 + $0xf8] sm:$0xff]
    %v499 = vld [vmem:[#allocation2 + $0x100] sm:$0xff]
    %v500 = vld [vmem:[#allocation2 + $0x108] sm:$0xff]
    %v501 = vld [vmem:[#allocation2 + $0x110] sm:$0xff]
    %v502 = vld [vmem:[#allocation2 + $0x118] sm:$0xff]
    %v503 = vld [vmem:[#allocation2 + $0x120] sm:$0xff]
    %v504 = vld [vmem:[#allocation2 + $0x128] sm:$0xff]
    %v505 = vld [vmem:[#allocation2 + $0x130] sm:$0xff]
    %v506 = vld [vmem:[#allocation2 + $0x138] sm:$0xff]
    %v507 = vld [vmem:[#allocation2 + $0x140] sm:$0xff]
    %v508 = vld [vmem:[#allocation2 + $0x148] sm:$0xff]
    %v509 = vld [vmem:[#allocation2 + $0x150] sm:$0xff]
    %v510 = vld [vmem:[#allocation2 + $0x158] sm:$0xff]
    %v511 = vld [vmem:[#allocation2 + $0x160] sm:$0xff]
    %v512 = vld [vmem:[#allocation2 + $0x168] sm:$0xff]
    %v513 = vld [vmem:[#allocation2 + $0x170] sm:$0xff]
    %v514 = vld [vmem:[#allocation2 + $0x178] sm:$0xff]
    %v515 = vld [vmem:[#allocation2 + $0x180] sm:$0xff]
    %v516 = vld [vmem:[#allocation2 + $0x188] sm:$0xff]
    %v517 = vld [vmem:[#allocation2 + $0x190] sm:$0xff]
    %v518 = vld [vmem:[#allocation2 + $0x198] sm:$0xff]
    %v519 = vld [vmem:[#allocation2 + $0x1a0] sm:$0xff]
    %v520 = vld [vmem:[#allocation2 + $0x1a8] sm:$0xff]
    %v521 = vld [vmem:[#allocation2 + $0x1b0] sm:$0xff]
    %v522 = vld [vmem:[#allocation2 + $0x1b8] sm:$0xff]
    %v523 = vld [vmem:[#allocation2 + $0x1c0] sm:$0xff]
    %v524 = vld [vmem:[#allocation2 + $0x1c8] sm:$0xff]
    %v525 = vld [vmem:[#allocation2 + $0x1d0] sm:$0xff]
    %v526 = vld [vmem:[#allocation2 + $0x1d8] sm:$0xff]
    %v527 = vld [vmem:[#allocation2 + $0x1e0] sm:$0xff]
    %v528 = vld [vmem:[#allocation2 + $0x1e8] sm:$0xff]
    %v529 = vld [vmem:[#allocation2 + $0x1f0] sm:$0xff]
    %v530 = vld [vmem:[#allocation2 + $0x1f8] sm:$0xff]
    %v531 = vld [vmem:[#allocation2 + $0x200] sm:$0xff]
    %v532 = vld [vmem:[#allocation2 + $0x208] sm:$0xff]
    %v533 = vld [vmem:[#allocation2 + $0x210] sm:$0xff]
    %v534 = vld [vmem:[#allocation2 + $0x218] sm:$0xff]
    %v535 = vld [vmem:[#allocation2 + $0x220] sm:$0xff]
    %v536 = vld [vmem:[#allocation2 + $0x228] sm:$0xff]
    %v537 = vld [vmem:[#allocation2 + $0x230] sm:$0xff]
    %v538 = vld [vmem:[#allocation2 + $0x238] sm:$0xff]
    %v539 = vld [vmem:[#allocation2 + $0x240] sm:$0xff]
    %v540 = vld [vmem:[#allocation2 + $0x248] sm:$0xff]
    %v541 = vld [vmem:[#allocation2 + $0x250] sm:$0xff]
    %v542 = vld [vmem:[#allocation2 + $0x258] sm:$0xff]
    %v543 = vld [vmem:[#allocation2 + $0x260] sm:$0xff]
    %v544 = vld [vmem:[#allocation2 + $0x268] sm:$0xff]
    %v545 = vld [vmem:[#allocation2 + $0x270] sm:$0xff]
    %v546 = vld [vmem:[#allocation2 + $0x278] sm:$0xff]
    %v547 = vld [vmem:[#allocation2 + $0x280] sm:$0xff]
    %v548 = vld [vmem:[#allocation2 + $0x288] sm:$0xff]
    %v549 = vld [vmem:[#allocation2 + $0x290] sm:$0xff]
    %v550 = vld [vmem:[#allocation2 + $0x298] sm:$0xff]
    %v551 = vld [vmem:[#allocation2 + $0x2a0] sm:$0xff]
    %v552 = vld [vmem:[#allocation2 + $0x2a8] sm:$0xff]
    %v553 = vld [vmem:[#allocation2 + $0x2b0] sm:$0xff]
    %v554 = vld [vmem:[#allocation2 + $0x2b8] sm:$0xff]
    %v555 = vld [vmem:[#allocation2 + $0x2c0] sm:$0xff]
    %v556 = vld [vmem:[#allocation2 + $0x2c8] sm:$0xff]
    %v557 = vld [vmem:[#allocation2 + $0x2d0] sm:$0xff]
    %v558 = vld [vmem:[#allocation2 + $0x2d8] sm:$0xff]
    %v559 = vld [vmem:[#allocation2 + $0x2e0] sm:$0xff]
    %v560 = vld [vmem:[#allocation2 + $0x2e8] sm:$0xff]
    %v561 = vld [vmem:[#allocation2 + $0x2f0] sm:$0xff]
    %v562 = vld [vmem:[#allocation2 + $0x2f8] sm:$0xff]
    %v563 = vld [vmem:[#allocation2 + $0x300] sm:$0xff]
    %v564 = vld [vmem:[#allocation2 + $0x308] sm:$0xff]
    %v565 = vld [vmem:[#allocation2 + $0x310] sm:$0xff]
    %v566 = vld [vmem:[#allocation2 + $0x318] sm:$0xff]
    %v567 = vld [vmem:[#allocation2 + $0x320] sm:$0xff]
    %v568 = vld [vmem:[#allocation2 + $0x328] sm:$0xff]
    %v569 = vld [vmem:[#allocation2 + $0x330] sm:$0xff]
    %v570 = vld [vmem:[#allocation2 + $0x338] sm:$0xff]
    %v571 = vld [vmem:[#allocation2 + $0x340] sm:$0xff]
    %v572 = vld [vmem:[#allocation2 + $0x348] sm:$0xff]
    %v573 = vld [vmem:[#allocation2 + $0x350] sm:$0xff]
    %v574 = vld [vmem:[#allocation2 + $0x358] sm:$0xff]
    %v575 = vld [vmem:[#allocation2 + $0x360] sm:$0xff]
    %v576 = vld [vmem:[#allocation2 + $0x368] sm:$0xff]
    %v577 = vld [vmem:[#allocation2 + $0x370] sm:$0xff]
    %v578 = vld [vmem:[#allocation2 + $0x378] sm:$0xff]
    %v579 = vld [vmem:[#allocation2 + $0x380] sm:$0xff]
    %v580 = vld [vmem:[#allocation2 + $0x388] sm:$0xff]
    %v581 = vld [vmem:[#allocation2 + $0x390] sm:$0xff]
    %v582 = vld [vmem:[#allocation2 + $0x398] sm:$0xff]
    %v583 = vld [vmem:[#allocation2 + $0x3a0] sm:$0xff]
    %v584 = vld [vmem:[#allocation2 + $0x3a8] sm:$0xff]
    %v585 = vld [vmem:[#allocation2 + $0x3b0] sm:$0xff]
    %v586 = vld [vmem:[#allocation2 + $0x3b8] sm:$0xff]
    %v587 = vld [vmem:[#allocation2 + $0x3c0] sm:$0xff]
    %v588 = vld [vmem:[#allocation2 + $0x3c8] sm:$0xff]
    %v589 = vld [vmem:[#allocation2 + $0x3d0] sm:$0xff]
    %v590 = vld [vmem:[#allocation2 + $0x3d8] sm:$0xff]
    %v591 = vld [vmem:[#allocation2 + $0x3e0] sm:$0xff]
    %v592 = vld [vmem:[#allocation2 + $0x3e8] sm:$0xff]
    %v593 = vld [vmem:[#allocation2 + $0x3f0] sm:$0xff]
    %v594 = vld [vmem:[#allocation2 + $0x3f8] sm:$0xff]
    %v595 = vld [vmem:[#allocation2 + $0x400] sm:$0xff]
    %v596 = vld [vmem:[#allocation2 + $0x408] sm:$0xff]
    %v597 = vld [vmem:[#allocation2 + $0x410] sm:$0xff]
    %v598 = vld [vmem:[#allocation2 + $0x418] sm:$0xff]
    %v599 = vld [vmem:[#allocation2 + $0x420] sm:$0xff]
    %v600 = vld [vmem:[#allocation2 + $0x428] sm:$0xff]
    %v601 = vld [vmem:[#allocation2 + $0x430] sm:$0xff]
    %v602 = vld [vmem:[#allocation2 + $0x438] sm:$0xff]
    %v603 = vld [vmem:[#allocation2 + $0x440] sm:$0xff]
    %v604 = vld [vmem:[#allocation2 + $0x448] sm:$0xff]
    %v605 = vld [vmem:[#allocation2 + $0x450] sm:$0xff]
    %v606 = vld [vmem:[#allocation2 + $0x458] sm:$0xff]
    %v607 = vld [vmem:[#allocation2 + $0x460] sm:$0xff]
    %v608 = vld [vmem:[#allocation2 + $0x468] sm:$0xff]
    %v609 = vld [vmem:[#allocation2 + $0x470] sm:$0xff]
    %v610 = vld [vmem:[#allocation2 + $0x478] sm:$0xff]
    %v611 = vld [vmem:[#allocation2 + $0x480] sm:$0xff]
    %v612 = vld [vmem:[#allocation2 + $0x488] sm:$0xff]
    %v613 = vld [vmem:[#allocation2 + $0x490] sm:$0xff]
    %v614 = vld [vmem:[#allocation2 + $0x498] sm:$0xff]
    %v615 = vld [vmem:[#allocation2 + $0x4a0] sm:$0xff]
    %v616 = vld [vmem:[#allocation2 + $0x4a8] sm:$0xff]
    %v617 = vld [vmem:[#allocation2 + $0x4b0] sm:$0xff]
    %v618 = vld [vmem:[#allocation2 + $0x4b8] sm:$0xff]
    %v619 = vld [vmem:[#allocation2 + $0x4c0] sm:$0xff]
    %v620 = vld [vmem:[#allocation2 + $0x4c8] sm:$0xff]
    %v621 = vld [vmem:[#allocation2 + $0x4d0] sm:$0xff]
    %v622 = vld [vmem:[#allocation2 + $0x4d8] sm:$0xff]
    %v623 = vld [vmem:[#allocation2 + $0x4e0] sm:$0xff]
    %v624 = vld [vmem:[#allocation2 + $0x4e8] sm:$0xff]
    %v625 = vld [vmem:[#allocation2 + $0x4f0] sm:$0xff]
    %v626 = vld [vmem:[#allocation2 + $0x4f8] sm:$0xff]
    %v627 = vld [vmem:[#allocation2 + $0x500] sm:$0xff]
    %v628 = vld [vmem:[#allocation2 + $0x508] sm:$0xff]
    %v629 = vld [vmem:[#allocation2 + $0x510] sm:$0xff]
    %v630 = vld [vmem:[#allocation2 + $0x518] sm:$0xff]
    %v631 = vld [vmem:[#allocation2 + $0x520] sm:$0xff]
    %v632 = vld [vmem:[#allocation2 + $0x528] sm:$0xff]
    %v633 = vld [vmem:[#allocation2 + $0x530] sm:$0xff]
    %v634 = vld [vmem:[#allocation2 + $0x538] sm:$0xff]
    %v635 = vld [vmem:[#allocation2 + $0x540] sm:$0xff]
    %v636 = vld [vmem:[#allocation2 + $0x548] sm:$0xff]
    %v637 = vld [vmem:[#allocation2 + $0x550] sm:$0xff]
    %v638 = vld [vmem:[#allocation2 + $0x558] sm:$0xff]
    %v639 = vld [vmem:[#allocation2 + $0x560] sm:$0xff]
    %v640 = vld [vmem:[#allocation2 + $0x568] sm:$0xff]
    %v641 = vld [vmem:[#allocation2 + $0x570] sm:$0xff]
    %v642 = vld [vmem:[#allocation2 + $0x578] sm:$0xff]
    %v643 = vld [vmem:[#allocation2 + $0x580] sm:$0xff]
    %v644 = vld [vmem:[#allocation2 + $0x588] sm:$0xff]
    %v645 = vld [vmem:[#allocation2 + $0x590] sm:$0xff]
    %v646 = vld [vmem:[#allocation2 + $0x598] sm:$0xff]
    %v647 = vld [vmem:[#allocation2 + $0x5a0] sm:$0xff]
    %v648 = vld [vmem:[#allocation2 + $0x5a8] sm:$0xff]
    %v649 = vld [vmem:[#allocation2 + $0x5b0] sm:$0xff]
    %v650 = vld [vmem:[#allocation2 + $0x5b8] sm:$0xff]
    %v651 = vld [vmem:[#allocation2 + $0x5c0] sm:$0xff]
    %v652 = vld [vmem:[#allocation2 + $0x5c8] sm:$0xff]
    %v653 = vld [vmem:[#allocation2 + $0x5d0] sm:$0xff]
    %v654 = vld [vmem:[#allocation2 + $0x5d8] sm:$0xff]
    %v655 = vld [vmem:[#allocation2 + $0x5e0] sm:$0xff]
    %v656 = vld [vmem:[#allocation2 + $0x5e8] sm:$0xff]
    %v657 = vld [vmem:[#allocation2 + $0x5f0] sm:$0xff]
    %v658 = vld [vmem:[#allocation2 + $0x5f8] sm:$0xff]
    %v659 = vld [vmem:[#allocation2 + $0x600] sm:$0xff]
    %v660 = vld [vmem:[#allocation2 + $0x608] sm:$0xff]
    %v661 = vld [vmem:[#allocation2 + $0x610] sm:$0xff]
    %v662 = vld [vmem:[#allocation2 + $0x618] sm:$0xff]
    %v663 = vld [vmem:[#allocation2 + $0x620] sm:$0xff]
    %v664 = vld [vmem:[#allocation2 + $0x628] sm:$0xff]
    %v665 = vld [vmem:[#allocation2 + $0x630] sm:$0xff]
    %v666 = vld [vmem:[#allocation2 + $0x638] sm:$0xff]
    %v667 = vld [vmem:[#allocation2 + $0x640] sm:$0xff]
    %v668 = vld [vmem:[#allocation2 + $0x648] sm:$0xff]
    %v669 = vld [vmem:[#allocation2 + $0x650] sm:$0xff]
    %v670 = vld [vmem:[#allocation2 + $0x658] sm:$0xff]
    %v671 = vld [vmem:[#allocation2 + $0x660] sm:$0xff]
    %v672 = vld [vmem:[#allocation2 + $0x668] sm:$0xff]
    %v673 = vld [vmem:[#allocation2 + $0x670] sm:$0xff]
    %v674 = vld [vmem:[#allocation2 + $0x678] sm:$0xff]
    %v675 = vld [vmem:[#allocation2 + $0x680] sm:$0xff]
    %v676 = vld [vmem:[#allocation2 + $0x688] sm:$0xff]
    %v677 = vld [vmem:[#allocation2 + $0x690] sm:$0xff]
    %v678 = vld [vmem:[#allocation2 + $0x698] sm:$0xff]
    %v679 = vld [vmem:[#allocation2 + $0x6a0] sm:$0xff]
    %v680 = vld [vmem:[#allocation2 + $0x6a8] sm:$0xff]
    %v681 = vld [vmem:[#allocation2 + $0x6b0] sm:$0xff]
    %v682 = vld [vmem:[#allocation2 + $0x6b8] sm:$0xff]
    %v683 = vld [vmem:[#allocation2 + $0x6c0] sm:$0xff]
    %v684 = vld [vmem:[#allocation2 + $0x6c8] sm:$0xff]
    %v685 = vld [vmem:[#allocation2 + $0x6d0] sm:$0xff]
    %v686 = vld [vmem:[#allocation2 + $0x6d8] sm:$0xff]
    %v687 = vld [vmem:[#allocation2 + $0x6e0] sm:$0xff]
    %v688 = vld [vmem:[#allocation2 + $0x6e8] sm:$0xff]
    %v689 = vld [vmem:[#allocation2 + $0x6f0] sm:$0xff]
    %v690 = vld [vmem:[#allocation2 + $0x6f8] sm:$0xff]
    %v691 = vld [vmem:[#allocation2 + $0x700] sm:$0xff]
    %v692 = vld [vmem:[#allocation2 + $0x708] sm:$0xff]
    %v693 = vld [vmem:[#allocation2 + $0x710] sm:$0xff]
    %v694 = vld [vmem:[#allocation2 + $0x718] sm:$0xff]
    %v695 = vld [vmem:[#allocation2 + $0x720] sm:$0xff]
    %v696 = vld [vmem:[#allocation2 + $0x728] sm:$0xff]
    %v697 = vld [vmem:[#allocation2 + $0x730] sm:$0xff]
    %v698 = vld [vmem:[#allocation2 + $0x738] sm:$0xff]
    %v699 = vld [vmem:[#allocation2 + $0x740] sm:$0xff]
    %v700 = vld [vmem:[#allocation2 + $0x748] sm:$0xff]
    %v701 = vld [vmem:[#allocation2 + $0x750] sm:$0xff]
    %v702 = vld [vmem:[#allocation2 + $0x758] sm:$0xff]
    %v703 = vld [vmem:[#allocation2 + $0x760] sm:$0xff]
    %v704 = vld [vmem:[#allocation2 + $0x768] sm:$0xff]
    %v705 = vld [vmem:[#allocation2 + $0x770] sm:$0xff]
    %v706 = vld [vmem:[#allocation2 + $0x778] sm:$0xff]
    %v707 = vld [vmem:[%s10] sm:$0x3f]
    %v709 = vlaneseq
    %v710 = vshrl.u32 %v709, 7
    %v711 = vsub.s32 0, %v710
    %v712 = vrot.slane %v707, %v711
    %v713 = vlaneseq
    %v714 = vshrl.u32 %v713, 7
    %v715 = vsub.s32 1, %v714
    %v716 = vrot.slane %v707, %v715
    %v717 = vlaneseq
    %v718 = vshrl.u32 %v717, 7
    %v719 = vsub.s32 2, %v718
    %v720 = vrot.slane %v707, %v719
    %v721 = vlaneseq
    %v722 = vshrl.u32 %v721, 7
    %v723 = vsub.s32 3, %v722
    %v724 = vrot.slane %v707, %v723
    %v725 = vlaneseq
    %v726 = vshrl.u32 %v725, 7
    %v727 = vsub.s32 4, %v726
    %v728 = vrot.slane %v707, %v727
    %v729 = vlaneseq
    %v730 = vshrl.u32 %v729, 7
    %v731 = vsub.s32 5, %v730
    %v732 = vrot.slane %v707, %v731
    %v740 = vsel %vm94, %v466, 0
    %742 = vmatprep.subr.mxu0 %v468
    %743 = vmatpush1.msra.mxu0 %v467
    %744 = vmatprep.subr.mxu0 %v474
    %745 = vmatpush1.msra.mxu0 %v473
    %746 = vmatprep.subr.mxu0 %v480
    %747 = vmatpush1.msra.mxu0 %v479
    %748 = vmatprep.subr.mxu0 %v486
    %749 = vmatpush1.msra.mxu0 %v485
    %750 = vmatprep.subr.mxu0 %v492
    %751 = vmatpush1.msra.mxu0 %v491
    %752 = vmatprep.subr.mxu0 %v498
    %753 = vmatpush1.msra.mxu0 %v497
    %754 = vmatprep.subr.mxu0 %v504
    %755 = vmatpush1.msra.mxu0 %v503
    %756 = vmatprep.subr.mxu0 %v510
    %757 = vmatpush1.msra.mxu0 %v509
    %758 = vmatprep.subr.mxu0 %v516
    %759 = vmatpush1.msra.mxu0 %v515
    %760 = vmatprep.subr.mxu0 %v522
    %761 = vmatpush1.msra.mxu0 %v521
    %762 = vmatprep.subr.mxu0 %v528
    %763 = vmatpush1.msra.mxu0 %v527
    %764 = vmatprep.subr.mxu0 %v534
    %765 = vmatpush1.msra.mxu0 %v533
    %766 = vmatprep.subr.mxu0 %v540
    %767 = vmatpush1.msra.mxu0 %v539
    %768 = vmatprep.subr.mxu0 %v546
    %769 = vmatpush1.msra.mxu0 %v545
    %770 = vmatprep.subr.mxu0 %v552
    %771 = vmatpush1.msra.mxu0 %v551
    %772 = vmatprep.subr.mxu0 %v558
    %773 = vmatpush1.msra.mxu0 %v557
    %774 = vmatprep.subr.mxu0 %v564
    %775 = vmatpush1.msra.mxu0 %v563
    %776 = vmatprep.subr.mxu0 %v570
    %777 = vmatpush1.msra.mxu0 %v569
    %778 = vmatprep.subr.mxu0 %v576
    %779 = vmatpush1.msra.mxu0 %v575
    %780 = vmatprep.subr.mxu0 %v582
    %781 = vmatpush1.msra.mxu0 %v581
    %782 = vmatprep.subr.mxu0 %v588
    %783 = vmatpush1.msra.mxu0 %v587
    %784 = vmatprep.subr.mxu0 %v594
    %785 = vmatpush1.msra.mxu0 %v593
    %786 = vmatprep.subr.mxu0 %v600
    %787 = vmatpush1.msra.mxu0 %v599
    %788 = vmatprep.subr.mxu0 %v606
    %789 = vmatpush1.msra.mxu0 %v605
    %790 = vmatprep.subr.mxu0 %v612
    %791 = vmatpush1.msra.mxu0 %v611
    %792 = vmatprep.subr.mxu0 %v618
    %793 = vmatpush1.msra.mxu0 %v617
    %794 = vmatprep.subr.mxu0 %v624
    %795 = vmatpush1.msra.mxu0 %v623
    %796 = vmatprep.subr.mxu0 %v630
    %797 = vmatpush1.msra.mxu0 %v629
    %798 = vmatprep.subr.mxu0 %v636
    %799 = vmatpush1.msra.mxu0 %v635
    %800 = vmatprep.subr.mxu0 %v642
    %801 = vmatpush1.msra.mxu0 %v641
    %802 = vmatprep.subr.mxu0 %v648
    %803 = vmatpush1.msra.mxu0 %v647
    %804 = vmatprep.subr.mxu0 %v654
    %805 = vmatpush1.msra.mxu0 %v653
    %806 = vmatprep.mubr.f32.mxu0 %v465
    %807 = vmatmul.mubr.f32.gmra.mrb[0].mxu0 %v464
    %v808 = vpop.f32.mrb[0].mxu0
    %v809 = vadd.f32 %v712, %v808
    %v810 = vpop.f32.mrb[0].mxu0
    %v811 = vadd.f32 %v716, %v810
    %812 = vdwg.mxu0
    %813 = vmatprep.subr.mxu0 %v660
    %814 = vmatpush1.msra.mxu0 %v659
    %815 = vmatprep.subr.mxu0 %v666
    %816 = vmatpush1.msra.mxu0 %v665
    %817 = vmatprep.subr.mxu0 %v672
    %818 = vmatpush1.msra.mxu0 %v671
    %819 = vmatprep.subr.mxu0 %v678
    %820 = vmatpush1.msra.mxu0 %v677
    %821 = vmatprep.subr.mxu0 %v684
    %822 = vmatpush1.msra.mxu0 %v683
    %823 = vmatprep.subr.mxu0 %v690
    %824 = vmatpush1.msra.mxu0 %v689
    %825 = vmatprep.subr.mxu0 %v696
    %826 = vmatpush1.msra.mxu0 %v695
    %827 = vmatprep.subr.mxu0 %v702
    %828 = vmatpush1.msra.mxu0 %v701
    %829 = vmatprep.subr.mxu0 0.0
    %830 = vmatpush1.msra.mxu0 0.0
    %831 = vmatprep.subr.mxu0 0.0
    %832 = vmatpush1.msra.mxu0 0.0
    %833 = vmatprep.subr.mxu0 0.0
    %834 = vmatpush1.msra.mxu0 0.0
    %835 = vmatprep.subr.mxu0 0.0
    %836 = vmatpush1.msra.mxu0 0.0
    %837 = vmatprep.subr.mxu0 0.0
    %838 = vmatpush1.msra.mxu0 0.0
    %839 = vmatprep.subr.mxu0 0.0
    %840 = vmatpush1.msra.mxu0 0.0
    %841 = vmatprep.subr.mxu0 0.0
    %842 = vmatpush1.msra.mxu0 0.0
    %843 = vmatprep.subr.mxu0 0.0
    %844 = vmatpush1.msra.mxu0 0.0
    %845 = vmatprep.subr.mxu0 0.0
    %846 = vmatpush1.msra.mxu0 0.0
    %847 = vmatprep.subr.mxu0 0.0
    %848 = vmatpush1.msra.mxu0 0.0
    %849 = vmatprep.subr.mxu0 0.0
    %850 = vmatpush1.msra.mxu0 0.0
    %851 = vmatprep.subr.mxu0 0.0
    %852 = vmatpush1.msra.mxu0 0.0
    %853 = vmatprep.subr.mxu0 0.0
    %854 = vmatpush1.msra.mxu0 0.0
    %855 = vmatprep.subr.mxu0 0.0
    %856 = vmatpush1.msra.mxu0 0.0
    %857 = vmatprep.subr.mxu0 0.0
    %858 = vmatpush1.msra.mxu0 0.0
    %859 = vmatprep.subr.mxu0 0.0
    %860 = vmatpush1.msra.mxu0 0.0
    %861 = vmatprep.subr.mxu0 0.0
    %862 = vmatpush1.msra.mxu0 0.0
    %863 = vmatprep.subr.mxu0 0.0
    %864 = vmatpush1.msra.mxu0 0.0
    %865 = vmatprep.subr.mxu0 0.0
    %866 = vmatpush1.msra.mxu0 0.0
    %867 = vmatprep.subr.mxu0 0.0
    %868 = vmatpush1.msra.mxu0 0.0
    %869 = vmatprep.subr.mxu0 0.0
    %870 = vmatpush1.msra.mxu0 0.0
    %871 = vmatprep.subr.mxu0 0.0
    %872 = vmatpush1.msra.mxu0 0.0
    %873 = vmatprep.subr.mxu0 0.0
    %874 = vmatpush1.msra.mxu0 0.0
    %875 = vmatprep.subr.mxu0 0.0
    %876 = vmatpush1.msra.mxu0 0.0
    %877 = vmatprep.mubr.f32.mxu0 0.0
    %878 = vmatmul.mubr.f32.gmra.mrb[0].mxu0 %v740
    %v879 = vpop.f32.mrb[0].mxu0
    %v880 = vadd.f32 %v809, %v879
    %v881 = vpop.f32.mrb[0].mxu0
    %v882 = vadd.f32 %v811, %v881
    %883 = vdwg.mxu0
    %884 = vmatprep.subr.mxu0 %v470
    %885 = vmatpush1.msra.mxu0 %v469
    %886 = vmatprep.subr.mxu0 %v476
    %887 = vmatpush1.msra.mxu0 %v475
    %888 = vmatprep.subr.mxu0 %v482
    %889 = vmatpush1.msra.mxu0 %v481
    %890 = vmatprep.subr.mxu0 %v488
    %891 = vmatpush1.msra.mxu0 %v487
    %892 = vmatprep.subr.mxu0 %v494
    %893 = vmatpush1.msra.mxu0 %v493
    %894 = vmatprep.subr.mxu0 %v500
    %895 = vmatpush1.msra.mxu0 %v499
    %896 = vmatprep.subr.mxu0 %v506
    %897 = vmatpush1.msra.mxu0 %v505
    %898 = vmatprep.subr.mxu0 %v512
    %899 = vmatpush1.msra.mxu0 %v511
    %900 = vmatprep.subr.mxu0 %v518
    %901 = vmatpush1.msra.mxu0 %v517
    %902 = vmatprep.subr.mxu0 %v524
    %903 = vmatpush1.msra.mxu0 %v523
    %904 = vmatprep.subr.mxu0 %v530
    %905 = vmatpush1.msra.mxu0 %v529
    %906 = vmatprep.subr.mxu0 %v536
    %907 = vmatpush1.msra.mxu0 %v535
    %908 = vmatprep.subr.mxu0 %v542
    %909 = vmatpush1.msra.mxu0 %v541
    %910 = vmatprep.subr.mxu0 %v548
    %911 = vmatpush1.msra.mxu0 %v547
    %912 = vmatprep.subr.mxu0 %v554
    %913 = vmatpush1.msra.mxu0 %v553
    %914 = vmatprep.subr.mxu0 %v560
    %915 = vmatpush1.msra.mxu0 %v559
    %916 = vmatprep.subr.mxu0 %v566
    %917 = vmatpush1.msra.mxu0 %v565
    %918 = vmatprep.subr.mxu0 %v572
    %919 = vmatpush1.msra.mxu0 %v571
    %920 = vmatprep.subr.mxu0 %v578
    %921 = vmatpush1.msra.mxu0 %v577
    %922 = vmatprep.subr.mxu0 %v584
    %923 = vmatpush1.msra.mxu0 %v583
    %924 = vmatprep.subr.mxu0 %v590
    %925 = vmatpush1.msra.mxu0 %v589
    %926 = vmatprep.subr.mxu0 %v596
    %927 = vmatpush1.msra.mxu0 %v595
    %928 = vmatprep.subr.mxu0 %v602
    %929 = vmatpush1.msra.mxu0 %v601
    %930 = vmatprep.subr.mxu0 %v608
    %931 = vmatpush1.msra.mxu0 %v607
    %932 = vmatprep.subr.mxu0 %v614
    %933 = vmatpush1.msra.mxu0 %v613
    %934 = vmatprep.subr.mxu0 %v620
    %935 = vmatpush1.msra.mxu0 %v619
    %936 = vmatprep.subr.mxu0 %v626
    %937 = vmatpush1.msra.mxu0 %v625
    %938 = vmatprep.subr.mxu0 %v632
    %939 = vmatpush1.msra.mxu0 %v631
    %940 = vmatprep.subr.mxu0 %v638
    %941 = vmatpush1.msra.mxu0 %v637
    %942 = vmatprep.subr.mxu0 %v644
    %943 = vmatpush1.msra.mxu0 %v643
    %944 = vmatprep.subr.mxu0 %v650
    %945 = vmatpush1.msra.mxu0 %v649
    %946 = vmatprep.subr.mxu0 %v656
    %947 = vmatpush1.msra.mxu0 %v655
    %948 = vmatprep.mubr.f32.mxu0 %v465
    %949 = vmatmul.mubr.f32.gmra.mrb[0].mxu0 %v464
    %v950 = vpop.f32.mrb[0].mxu0
    %v951 = vadd.f32 %v720, %v950
    %v952 = vpop.f32.mrb[0].mxu0
    %v953 = vadd.f32 %v724, %v952
    %954 = vdwg.mxu0
    %955 = vmatprep.subr.mxu0 %v662
    %956 = vmatpush1.msra.mxu0 %v661
    %957 = vmatprep.subr.mxu0 %v668
    %958 = vmatpush1.msra.mxu0 %v667
    %959 = vmatprep.subr.mxu0 %v674
    %960 = vmatpush1.msra.mxu0 %v673
    %961 = vmatprep.subr.mxu0 %v680
    %962 = vmatpush1.msra.mxu0 %v679
    %963 = vmatprep.subr.mxu0 %v686
    %964 = vmatpush1.msra.mxu0 %v685
    %965 = vmatprep.subr.mxu0 %v692
    %966 = vmatpush1.msra.mxu0 %v691
    %967 = vmatprep.subr.mxu0 %v698
    %968 = vmatpush1.msra.mxu0 %v697
    %969 = vmatprep.subr.mxu0 %v704
    %970 = vmatpush1.msra.mxu0 %v703
    %971 = vmatprep.subr.mxu0 0.0
    %972 = vmatpush1.msra.mxu0 0.0
    %973 = vmatprep.subr.mxu0 0.0
    %974 = vmatpush1.msra.mxu0 0.0
    %975 = vmatprep.subr.mxu0 0.0
    %976 = vmatpush1.msra.mxu0 0.0
    %977 = vmatprep.subr.mxu0 0.0
    %978 = vmatpush1.msra.mxu0 0.0
    %979 = vmatprep.subr.mxu0 0.0
    %980 = vmatpush1.msra.mxu0 0.0
    %981 = vmatprep.subr.mxu0 0.0
    %982 = vmatpush1.msra.mxu0 0.0
    %983 = vmatprep.subr.mxu0 0.0
    %984 = vmatpush1.msra.mxu0 0.0
    %985 = vmatprep.subr.mxu0 0.0
    %986 = vmatpush1.msra.mxu0 0.0
    %987 = vmatprep.subr.mxu0 0.0
    %988 = vmatpush1.msra.mxu0 0.0
    %989 = vmatprep.subr.mxu0 0.0
    %990 = vmatpush1.msra.mxu0 0.0
    %991 = vmatprep.subr.mxu0 0.0
    %992 = vmatpush1.msra.mxu0 0.0
    %993 = vmatprep.subr.mxu0 0.0
    %994 = vmatpush1.msra.mxu0 0.0
    %995 = vmatprep.subr.mxu0 0.0
    %996 = vmatpush1.msra.mxu0 0.0
    %997 = vmatprep.subr.mxu0 0.0
    %998 = vmatpush1.msra.mxu0 0.0
    %999 = vmatprep.subr.mxu0 0.0
    %1000 = vmatpush1.msra.mxu0 0.0
    %1001 = vmatprep.subr.mxu0 0.0
    %1002 = vmatpush1.msra.mxu0 0.0
    %1003 = vmatprep.subr.mxu0 0.0
    %1004 = vmatpush1.msra.mxu0 0.0
    %1005 = vmatprep.subr.mxu0 0.0
    %1006 = vmatpush1.msra.mxu0 0.0
    %1007 = vmatprep.subr.mxu0 0.0
    %1008 = vmatpush1.msra.mxu0 0.0
    %1009 = vmatprep.subr.mxu0 0.0
    %1010 = vmatpush1.msra.mxu0 0.0
    %1011 = vmatprep.subr.mxu0 0.0
    %1012 = vmatpush1.msra.mxu0 0.0
    %1013 = vmatprep.subr.mxu0 0.0
    %1014 = vmatpush1.msra.mxu0 0.0
    %1015 = vmatprep.subr.mxu0 0.0
    %1016 = vmatpush1.msra.mxu0 0.0
    %1017 = vmatprep.subr.mxu0 0.0
    %1018 = vmatpush1.msra.mxu0 0.0
    %1019 = vmatprep.mubr.f32.mxu0 0.0
    %1020 = vmatmul.mubr.f32.gmra.mrb[0].mxu0 %v740
    %v1021 = vpop.f32.mrb[0].mxu0
    %v1022 = vadd.f32 %v951, %v1021
    %v1023 = vpop.f32.mrb[0].mxu0
    %v1024 = vadd.f32 %v953, %v1023
    %1025 = vdwg.mxu0
    %1026 = vmatprep.subr.mxu0 %v472
    %1027 = vmatpush1.msra.mxu0 %v471
    %1028 = vmatprep.subr.mxu0 %v478
    %1029 = vmatpush1.msra.mxu0 %v477
    %1030 = vmatprep.subr.mxu0 %v484
    %1031 = vmatpush1.msra.mxu0 %v483
    %1032 = vmatprep.subr.mxu0 %v490
    %1033 = vmatpush1.msra.mxu0 %v489
    %1034 = vmatprep.subr.mxu0 %v496
    %1035 = vmatpush1.msra.mxu0 %v495
    %1036 = vmatprep.subr.mxu0 %v502
    %1037 = vmatpush1.msra.mxu0 %v501
    %1038 = vmatprep.subr.mxu0 %v508
    %1039 = vmatpush1.msra.mxu0 %v507
    %1040 = vmatprep.subr.mxu0 %v514
    %1041 = vmatpush1.msra.mxu0 %v513
    %1042 = vmatprep.subr.mxu0 %v520
    %1043 = vmatpush1.msra.mxu0 %v519
    %1044 = vmatprep.subr.mxu0 %v526
    %1045 = vmatpush1.msra.mxu0 %v525
    %1046 = vmatprep.subr.mxu0 %v532
    %1047 = vmatpush1.msra.mxu0 %v531
    %1048 = vmatprep.subr.mxu0 %v538
    %1049 = vmatpush1.msra.mxu0 %v537
    %1050 = vmatprep.subr.mxu0 %v544
    %1051 = vmatpush1.msra.mxu0 %v543
    %1052 = vmatprep.subr.mxu0 %v550
    %1053 = vmatpush1.msra.mxu0 %v549
    %1054 = vmatprep.subr.mxu0 %v556
    %1055 = vmatpush1.msra.mxu0 %v555
    %1056 = vmatprep.subr.mxu0 %v562
    %1057 = vmatpush1.msra.mxu0 %v561
    %1058 = vmatprep.subr.mxu0 %v568
    %1059 = vmatpush1.msra.mxu0 %v567
    %1060 = vmatprep.subr.mxu0 %v574
    %1061 = vmatpush1.msra.mxu0 %v573
    %1062 = vmatprep.subr.mxu0 %v580
    %1063 = vmatpush1.msra.mxu0 %v579
    %1064 = vmatprep.subr.mxu0 %v586
    %1065 = vmatpush1.msra.mxu0 %v585
    %1066 = vmatprep.subr.mxu0 %v592
    %1067 = vmatpush1.msra.mxu0 %v591
    %1068 = vmatprep.subr.mxu0 %v598
    %1069 = vmatpush1.msra.mxu0 %v597
    %1070 = vmatprep.subr.mxu0 %v604
    %1071 = vmatpush1.msra.mxu0 %v603
    %1072 = vmatprep.subr.mxu0 %v610
    %1073 = vmatpush1.msra.mxu0 %v609
    %1074 = vmatprep.subr.mxu0 %v616
    %1075 = vmatpush1.msra.mxu0 %v615
    %1076 = vmatprep.subr.mxu0 %v622
    %1077 = vmatpush1.msra.mxu0 %v621
    %1078 = vmatprep.subr.mxu0 %v628
    %1079 = vmatpush1.msra.mxu0 %v627
    %1080 = vmatprep.subr.mxu0 %v634
    %1081 = vmatpush1.msra.mxu0 %v633
    %1082 = vmatprep.subr.mxu0 %v640
    %1083 = vmatpush1.msra.mxu0 %v639
    %1084 = vmatprep.subr.mxu0 %v646
    %1085 = vmatpush1.msra.mxu0 %v645
    %1086 = vmatprep.subr.mxu0 %v652
    %1087 = vmatpush1.msra.mxu0 %v651
    %1088 = vmatprep.subr.mxu0 %v658
    %1089 = vmatpush1.msra.mxu0 %v657
    %1090 = vmatprep.mubr.f32.mxu0 %v465
    %1091 = vmatmul.mubr.f32.gmra.mrb[0].mxu0 %v464
    %v1092 = vpop.f32.mrb[0].mxu0
    %v1093 = vadd.f32 %v728, %v1092
    %v1094 = vpop.f32.mrb[0].mxu0
    %v1095 = vadd.f32 %v732, %v1094
    %1096 = vdwg.mxu0
    %1097 = vmatprep.subr.mxu0 %v664
    %1098 = vmatpush1.msra.mxu0 %v663
    %1099 = vmatprep.subr.mxu0 %v670
    %1100 = vmatpush1.msra.mxu0 %v669
    %1101 = vmatprep.subr.mxu0 %v676
    %1102 = vmatpush1.msra.mxu0 %v675
    %1103 = vmatprep.subr.mxu0 %v682
    %1104 = vmatpush1.msra.mxu0 %v681
    %1105 = vmatprep.subr.mxu0 %v688
    %1106 = vmatpush1.msra.mxu0 %v687
    %1107 = vmatprep.subr.mxu0 %v694
    %1108 = vmatpush1.msra.mxu0 %v693
    %1109 = vmatprep.subr.mxu0 %v700
    %1110 = vmatpush1.msra.mxu0 %v699
    %1111 = vmatprep.subr.mxu0 %v706
    %1112 = vmatpush1.msra.mxu0 %v705
    %1113 = vmatprep.subr.mxu0 0.0
    %1114 = vmatpush1.msra.mxu0 0.0
    %1115 = vmatprep.subr.mxu0 0.0
    %1116 = vmatpush1.msra.mxu0 0.0
    %1117 = vmatprep.subr.mxu0 0.0
    %1118 = vmatpush1.msra.mxu0 0.0
    %1119 = vmatprep.subr.mxu0 0.0
    %1120 = vmatpush1.msra.mxu0 0.0
    %1121 = vmatprep.subr.mxu0 0.0
    %1122 = vmatpush1.msra.mxu0 0.0
    %1123 = vmatprep.subr.mxu0 0.0
    %1124 = vmatpush1.msra.mxu0 0.0
    %1125 = vmatprep.subr.mxu0 0.0
    %1126 = vmatpush1.msra.mxu0 0.0
    %1127 = vmatprep.subr.mxu0 0.0
    %1128 = vmatpush1.msra.mxu0 0.0
    %1129 = vmatprep.subr.mxu0 0.0
    %1130 = vmatpush1.msra.mxu0 0.0
    %1131 = vmatprep.subr.mxu0 0.0
    %1132 = vmatpush1.msra.mxu0 0.0
    %1133 = vmatprep.subr.mxu0 0.0
    %1134 = vmatpush1.msra.mxu0 0.0
    %1135 = vmatprep.subr.mxu0 0.0
    %1136 = vmatpush1.msra.mxu0 0.0
    %1137 = vmatprep.subr.mxu0 0.0
    %1138 = vmatpush1.msra.mxu0 0.0
    %1139 = vmatprep.subr.mxu0 0.0
    %1140 = vmatpush1.msra.mxu0 0.0
    %1141 = vmatprep.subr.mxu0 0.0
    %1142 = vmatpush1.msra.mxu0 0.0
    %1143 = vmatprep.subr.mxu0 0.0
    %1144 = vmatpush1.msra.mxu0 0.0
    %1145 = vmatprep.subr.mxu0 0.0
    %1146 = vmatpush1.msra.mxu0 0.0
    %1147 = vmatprep.subr.mxu0 0.0
    %1148 = vmatpush1.msra.mxu0 0.0
    %1149 = vmatprep.subr.mxu0 0.0
    %1150 = vmatpush1.msra.mxu0 0.0
    %1151 = vmatprep.subr.mxu0 0.0
    %1152 = vmatpush1.msra.mxu0 0.0
    %1153 = vmatprep.subr.mxu0 0.0
    %1154 = vmatpush1.msra.mxu0 0.0
    %1155 = vmatprep.subr.mxu0 0.0
    %1156 = vmatpush1.msra.mxu0 0.0
    %1157 = vmatprep.subr.mxu0 0.0
    %1158 = vmatpush1.msra.mxu0 0.0
    %1159 = vmatprep.subr.mxu0 0.0
    %1160 = vmatpush1.msra.mxu0 0.0
    %1161 = vmatprep.mubr.f32.mxu0 0.0
    %1162 = vmatmul.mubr.f32.gmra.mrb[0].mxu0 %v740
    %v1163 = vpop.f32.mrb[0].mxu0
    %v1164 = vadd.f32 %v1093, %v1163
    %v1165 = vpop.f32.mrb[0].mxu0
    %v1166 = vadd.f32 %v1095, %v1165
    %1167 = vdwg.mxu0
    %v1168 = vld [vmem:[%s11] sm:$0x3f]
    %vm1169 = vcmp.ge.f32.partialorder %v880, 0.0
    %vm1170 = vcmp.ge.f32.partialorder %v882, 0.0
    %vm1171 = vcmp.ge.f32.partialorder %v1022, 0.0
    %vm1172 = vcmp.ge.f32.partialorder %v1024, 0.0
    %vm1173 = vcmp.ge.f32.partialorder %v1164, 0.0
    %vm1174 = vcmp.ge.f32.partialorder %v1166, 0.0
    %v1176 = vlaneseq
    %v1177 = vshrl.u32 %v1176, 7
    %v1178 = vsub.s32 0, %v1177
    %v1179 = vrot.slane %v1168, %v1178
    %v1180 = vlaneseq
    %v1181 = vshrl.u32 %v1180, 7
    %v1182 = vsub.s32 1, %v1181
    %v1183 = vrot.slane %v1168, %v1182
    %v1184 = vlaneseq
    %v1185 = vshrl.u32 %v1184, 7
    %v1186 = vsub.s32 2, %v1185
    %v1187 = vrot.slane %v1168, %v1186
    %v1188 = vlaneseq
    %v1189 = vshrl.u32 %v1188, 7
    %v1190 = vsub.s32 3, %v1189
    %v1191 = vrot.slane %v1168, %v1190
    %v1192 = vlaneseq
    %v1193 = vshrl.u32 %v1192, 7
    %v1194 = vsub.s32 4, %v1193
    %v1195 = vrot.slane %v1168, %v1194
    %v1196 = vlaneseq
    %v1197 = vshrl.u32 %v1196, 7
    %v1198 = vsub.s32 5, %v1197
    %v1199 = vrot.slane %v1168, %v1198
    %v1206 = vmul.f32 %v1179, %v880
    %v1207 = vmul.f32 %v1183, %v882
    %v1208 = vmul.f32 %v1187, %v1022
    %v1209 = vmul.f32 %v1191, %v1024
    %v1210 = vmul.f32 %v1195, %v1164
    %v1211 = vmul.f32 %v1199, %v1166
    %v1212 = vsel %vm1169, %v880, %v1206
    %v1213 = vsel %vm1170, %v882, %v1207
    %v1214 = vsel %vm1171, %v1022, %v1208
    %v1215 = vsel %vm1172, %v1024, %v1209
    %v1216 = vsel %vm1173, %v1164, %v1210
    %v1217 = vsel %vm1174, %v1166, %v1211
    %v1218 = vld [vmem:[%s12] sm:$0xff]
    %v1219 = vld [vmem:[%s12 + $0x8] sm:$0xff]
    %v1220 = vld [vmem:[%s12 + $0x10] sm:$0xff]
    %v1221 = vld [vmem:[%s12 + $0x18] sm:$0xff]
    %v1222 = vld [vmem:[%s12 + $0x20] sm:$0xff]
    %v1223 = vld [vmem:[%s12 + $0x28] sm:$0xff]
    %v1224 = vld [vmem:[%s12 + $0x30] sm:$0xff]
    %v1225 = vld [vmem:[%s12 + $0x38] sm:$0xff]
    %v1226 = vld [vmem:[%s12 + $0x40] sm:$0xff]
    %v1227 = vld [vmem:[%s12 + $0x48] sm:$0xff]
    %v1228 = vld [vmem:[%s12 + $0x50] sm:$0xff]
    %v1229 = vld [vmem:[%s12 + $0x58] sm:$0xff]
    %v1230 = vld [vmem:[%s12 + $0x60] sm:$0xff]
    %v1231 = vld [vmem:[%s12 + $0x68] sm:$0xff]
    %v1232 = vld [vmem:[%s12 + $0x70] sm:$0xff]
    %v1233 = vld [vmem:[%s12 + $0x78] sm:$0xff]
    %v1234 = vld [vmem:[%s12 + $0x80] sm:$0xff]
    %v1235 = vld [vmem:[%s12 + $0x88] sm:$0xff]
    %v1236 = vld [vmem:[%s12 + $0x90] sm:$0xff]
    %v1237 = vld [vmem:[%s12 + $0x98] sm:$0xff]
    %v1238 = vld [vmem:[%s12 + $0xa0] sm:$0xff]
    %v1239 = vld [vmem:[%s12 + $0xa8] sm:$0xff]
    %v1240 = vld [vmem:[%s12 + $0xb0] sm:$0xff]
    %v1241 = vld [vmem:[%s12 + $0xb8] sm:$0xff]
    %v1242 = vld [vmem:[%s12 + $0xc0] sm:$0xff]
    %v1243 = vld [vmem:[%s12 + $0xc8] sm:$0xff]
    %v1244 = vld [vmem:[%s12 + $0xd0] sm:$0xff]
    %v1245 = vld [vmem:[%s12 + $0xd8] sm:$0xff]
    %v1246 = vld [vmem:[%s12 + $0xe0] sm:$0xff]
    %v1247 = vld [vmem:[%s12 + $0xe8] sm:$0xff]
    %v1248 = vld [vmem:[%s12 + $0xf0] sm:$0xff]
    %v1249 = vld [vmem:[%s12 + $0xf8] sm:$0xff]
    %v1250 = vld [vmem:[%s12 + $0x100] sm:$0xff]
    %v1251 = vld [vmem:[%s12 + $0x108] sm:$0xff]
    %v1252 = vld [vmem:[%s12 + $0x110] sm:$0xff]
    %v1253 = vld [vmem:[%s12 + $0x118] sm:$0xff]
    %v1254 = vld [vmem:[%s12 + $0x120] sm:$0xff]
    %v1255 = vld [vmem:[%s12 + $0x128] sm:$0xff]
    %v1256 = vld [vmem:[%s12 + $0x130] sm:$0xff]
    %v1257 = vld [vmem:[%s12 + $0x138] sm:$0xff]
    %v1258 = vld [vmem:[%s12 + $0x140] sm:$0xff]
    %v1259 = vld [vmem:[%s12 + $0x148] sm:$0xff]
    %v1260 = vld [vmem:[%s12 + $0x150] sm:$0xff]
    %v1261 = vld [vmem:[%s12 + $0x158] sm:$0xff]
    %v1262 = vld [vmem:[%s12 + $0x160] sm:$0xff]
    %v1263 = vld [vmem:[%s12 + $0x168] sm:$0xff]
    %v1264 = vld [vmem:[%s12 + $0x170] sm:$0xff]
    %v1265 = vld [vmem:[%s12 + $0x178] sm:$0xff]
    %v1266 = vld [vmem:[%s12 + $0x180] sm:$0xff]
    %v1267 = vld [vmem:[%s12 + $0x188] sm:$0xff]
    %v1268 = vld [vmem:[%s12 + $0x190] sm:$0xff]
    %v1269 = vld [vmem:[%s12 + $0x198] sm:$0xff]
    %v1270 = vld [vmem:[%s12 + $0x1a0] sm:$0xff]
    %v1271 = vld [vmem:[%s12 + $0x1a8] sm:$0xff]
    %v1272 = vld [vmem:[%s12 + $0x1b0] sm:$0xff]
    %v1273 = vld [vmem:[%s12 + $0x1b8] sm:$0xff]
    %v1274 = vld [vmem:[%s12 + $0x1c0] sm:$0xff]
    %v1275 = vld [vmem:[%s12 + $0x1c8] sm:$0xff]
    %v1276 = vld [vmem:[%s12 + $0x1d0] sm:$0xff]
    %v1277 = vld [vmem:[%s12 + $0x1d8] sm:$0xff]
    %v1278 = vld [vmem:[%s12 + $0x1e0] sm:$0xff]
    %v1279 = vld [vmem:[%s12 + $0x1e8] sm:$0xff]
    %v1280 = vld [vmem:[%s12 + $0x1f0] sm:$0xff]
    %v1281 = vld [vmem:[%s12 + $0x1f8] sm:$0xff]
    %v1282 = vld [vmem:[%s12 + $0x200] sm:$0xff]
    %v1283 = vld [vmem:[%s12 + $0x208] sm:$0xff]
    %v1284 = vld [vmem:[%s12 + $0x210] sm:$0xff]
    %v1285 = vld [vmem:[%s12 + $0x218] sm:$0xff]
    %v1286 = vld [vmem:[%s12 + $0x220] sm:$0xff]
    %v1287 = vld [vmem:[%s12 + $0x228] sm:$0xff]
    %v1288 = vld [vmem:[%s12 + $0x230] sm:$0xff]
    %v1289 = vld [vmem:[%s12 + $0x238] sm:$0xff]
    %v1290 = vld [vmem:[%s12 + $0x240] sm:$0xff]
    %v1291 = vld [vmem:[%s12 + $0x248] sm:$0xff]
    %v1292 = vld [vmem:[%s12 + $0x250] sm:$0xff]
    %v1293 = vld [vmem:[%s12 + $0x258] sm:$0xff]
    %v1294 = vld [vmem:[%s12 + $0x260] sm:$0xff]
    %v1295 = vld [vmem:[%s12 + $0x268] sm:$0xff]
    %v1296 = vld [vmem:[%s12 + $0x270] sm:$0xff]
    %v1297 = vld [vmem:[%s12 + $0x278] sm:$0xff]
    %v1298 = vld [vmem:[%s12 + $0x280] sm:$0xff]
    %v1299 = vld [vmem:[%s12 + $0x288] sm:$0xff]
    %v1300 = vld [vmem:[%s12 + $0x290] sm:$0xff]
    %v1301 = vld [vmem:[%s12 + $0x298] sm:$0xff]
    %v1302 = vld [vmem:[%s12 + $0x2a0] sm:$0xff]
    %v1303 = vld [vmem:[%s12 + $0x2a8] sm:$0xff]
    %v1304 = vld [vmem:[%s12 + $0x2b0] sm:$0xff]
    %v1305 = vld [vmem:[%s12 + $0x2b8] sm:$0xff]
    %v1306 = vld [vmem:[%s12 + $0x2c0] sm:$0xff]
    %v1307 = vld [vmem:[%s12 + $0x2c8] sm:$0xff]
    %v1308 = vld [vmem:[%s12 + $0x2d0] sm:$0xff]
    %v1309 = vld [vmem:[%s12 + $0x2d8] sm:$0xff]
    %v1310 = vld [vmem:[%s12 + $0x2e0] sm:$0xff]
    %v1311 = vld [vmem:[%s12 + $0x2e8] sm:$0xff]
    %v1312 = vld [vmem:[%s12 + $0x2f0] sm:$0xff]
    %v1313 = vld [vmem:[%s12 + $0x2f8] sm:$0xff]
    %v1314 = vld [vmem:[%s12 + $0x300] sm:$0xff]
    %v1315 = vld [vmem:[%s12 + $0x308] sm:$0xff]
    %v1316 = vld [vmem:[%s12 + $0x310] sm:$0xff]
    %v1317 = vld [vmem:[%s12 + $0x318] sm:$0xff]
    %v1318 = vld [vmem:[%s12 + $0x320] sm:$0xff]
    %v1319 = vld [vmem:[%s12 + $0x328] sm:$0xff]
    %v1320 = vld [vmem:[%s12 + $0x330] sm:$0xff]
    %v1321 = vld [vmem:[%s12 + $0x338] sm:$0xff]
    %v1322 = vld [vmem:[%s12 + $0x340] sm:$0xff]
    %v1323 = vld [vmem:[%s12 + $0x348] sm:$0xff]
    %v1324 = vld [vmem:[%s12 + $0x350] sm:$0xff]
    %v1325 = vld [vmem:[%s12 + $0x358] sm:$0xff]
    %v1326 = vld [vmem:[%s12 + $0x360] sm:$0xff]
    %v1327 = vld [vmem:[%s12 + $0x368] sm:$0xff]
    %v1328 = vld [vmem:[%s12 + $0x370] sm:$0xff]
    %v1329 = vld [vmem:[%s12 + $0x378] sm:$0xff]
    %v1330 = vld [vmem:[%s12 + $0x380] sm:$0xff]
    %v1331 = vld [vmem:[%s12 + $0x388] sm:$0xff]
    %v1332 = vld [vmem:[%s12 + $0x390] sm:$0xff]
    %v1333 = vld [vmem:[%s12 + $0x398] sm:$0xff]
    %v1334 = vld [vmem:[%s12 + $0x3a0] sm:$0xff]
    %v1335 = vld [vmem:[%s12 + $0x3a8] sm:$0xff]
    %v1336 = vld [vmem:[%s12 + $0x3b0] sm:$0xff]
    %v1337 = vld [vmem:[%s12 + $0x3b8] sm:$0xff]
    %v1338 = vld [vmem:[%s12 + $0x3c0] sm:$0xff]
    %v1339 = vld [vmem:[%s12 + $0x3c8] sm:$0xff]
    %v1340 = vld [vmem:[%s12 + $0x3d0] sm:$0xff]
    %v1341 = vld [vmem:[%s12 + $0x3d8] sm:$0xff]
    %v1342 = vld [vmem:[%s12 + $0x3e0] sm:$0xff]
    %v1343 = vld [vmem:[%s12 + $0x3e8] sm:$0xff]
    %v1344 = vld [vmem:[%s12 + $0x3f0] sm:$0xff]
    %v1345 = vld [vmem:[%s12 + $0x3f8] sm:$0xff]
    %v1346 = vld [vmem:[%s12 + $0x400] sm:$0xff]
    %v1347 = vld [vmem:[%s12 + $0x408] sm:$0xff]
    %v1348 = vld [vmem:[%s12 + $0x410] sm:$0xff]
    %v1349 = vld [vmem:[%s12 + $0x418] sm:$0xff]
    %v1350 = vld [vmem:[%s12 + $0x420] sm:$0xff]
    %v1351 = vld [vmem:[%s12 + $0x428] sm:$0xff]
    %v1352 = vld [vmem:[%s12 + $0x430] sm:$0xff]
    %v1353 = vld [vmem:[%s12 + $0x438] sm:$0xff]
    %v1354 = vld [vmem:[%s12 + $0x440] sm:$0xff]
    %v1355 = vld [vmem:[%s12 + $0x448] sm:$0xff]
    %v1356 = vld [vmem:[%s12 + $0x450] sm:$0xff]
    %v1357 = vld [vmem:[%s12 + $0x458] sm:$0xff]
    %v1358 = vld [vmem:[%s12 + $0x460] sm:$0xff]
    %v1359 = vld [vmem:[%s12 + $0x468] sm:$0xff]
    %v1360 = vld [vmem:[%s12 + $0x470] sm:$0xff]
    %v1361 = vld [vmem:[%s12 + $0x478] sm:$0xff]
    %v1362 = vld [vmem:[%s13] sm:$0x7]
    %v1364 = vlaneseq
    %v1365 = vshrl.u32 %v1364, 7
    %v1366 = vsub.s32 0, %v1365
    %v1367 = vrot.slane %v1362, %v1366
    %v1368 = vlaneseq
    %v1369 = vshrl.u32 %v1368, 7
    %v1370 = vsub.s32 1, %v1369
    %v1371 = vrot.slane %v1362, %v1370
    %v1372 = vlaneseq
    %v1373 = vshrl.u32 %v1372, 7
    %v1374 = vsub.s32 2, %v1373
    %v1375 = vrot.slane %v1362, %v1374
    %1379 = vmatprep.subr.mxu0 %v1219
    %1380 = vmatpush1.msra.mxu0 %v1218
    %1381 = vmatprep.subr.mxu0 %v1222
    %1382 = vmatpush1.msra.mxu0 %v1221
    %1383 = vmatprep.subr.mxu0 %v1225
    %1384 = vmatpush1.msra.mxu0 %v1224
    %1385 = vmatprep.subr.mxu0 %v1228
    %1386 = vmatpush1.msra.mxu0 %v1227
    %1387 = vmatprep.subr.mxu0 %v1231
    %1388 = vmatpush1.msra.mxu0 %v1230
    %1389 = vmatprep.subr.mxu0 %v1234
    %1390 = vmatpush1.msra.mxu0 %v1233
    %1391 = vmatprep.subr.mxu0 %v1237
    %1392 = vmatpush1.msra.mxu0 %v1236
    %1393 = vmatprep.subr.mxu0 %v1240
    %1394 = vmatpush1.msra.mxu0 %v1239
    %1395 = vmatprep.subr.mxu0 %v1243
    %1396 = vmatpush1.msra.mxu0 %v1242
    %1397 = vmatprep.subr.mxu0 %v1246
    %1398 = vmatpush1.msra.mxu0 %v1245
    %1399 = vmatprep.subr.mxu0 %v1249
    %1400 = vmatpush1.msra.mxu0 %v1248
    %1401 = vmatprep.subr.mxu0 %v1252
    %1402 = vmatpush1.msra.mxu0 %v1251
    %1403 = vmatprep.subr.mxu0 %v1255
    %1404 = vmatpush1.msra.mxu0 %v1254
    %1405 = vmatprep.subr.mxu0 %v1258
    %1406 = vmatpush1.msra.mxu0 %v1257
    %1407 = vmatprep.subr.mxu0 %v1261
    %1408 = vmatpush1.msra.mxu0 %v1260
    %1409 = vmatprep.subr.mxu0 %v1264
    %1410 = vmatpush1.msra.mxu0 %v1263
    %1411 = vmatprep.subr.mxu0 %v1267
    %1412 = vmatpush1.msra.mxu0 %v1266
    %1413 = vmatprep.subr.mxu0 %v1270
    %1414 = vmatpush1.msra.mxu0 %v1269
    %1415 = vmatprep.subr.mxu0 %v1273
    %1416 = vmatpush1.msra.mxu0 %v1272
    %1417 = vmatprep.subr.mxu0 %v1276
    %1418 = vmatpush1.msra.mxu0 %v1275
    %1419 = vmatprep.subr.mxu0 %v1279
    %1420 = vmatpush1.msra.mxu0 %v1278
    %1421 = vmatprep.subr.mxu0 %v1282
    %1422 = vmatpush1.msra.mxu0 %v1281
    %1423 = vmatprep.subr.mxu0 %v1285
    %1424 = vmatpush1.msra.mxu0 %v1284
    %1425 = vmatprep.subr.mxu0 %v1288
    %1426 = vmatpush1.msra.mxu0 %v1287
    %1427 = vmatprep.subr.mxu0 %v1291
    %1428 = vmatpush1.msra.mxu0 %v1290
    %1429 = vmatprep.subr.mxu0 %v1294
    %1430 = vmatpush1.msra.mxu0 %v1293
    %1431 = vmatprep.subr.mxu0 %v1297
    %1432 = vmatpush1.msra.mxu0 %v1296
    %1433 = vmatprep.subr.mxu0 %v1300
    %1434 = vmatpush1.msra.mxu0 %v1299
    %1435 = vmatprep.subr.mxu0 %v1303
    %1436 = vmatpush1.msra.mxu0 %v1302
    %1437 = vmatprep.subr.mxu0 %v1306
    %1438 = vmatpush1.msra.mxu0 %v1305
    %1439 = vmatprep.subr.mxu0 %v1309
    %1440 = vmatpush1.msra.mxu0 %v1308
    %1441 = vmatprep.subr.mxu0 %v1312
    %1442 = vmatpush1.msra.mxu0 %v1311
    %1443 = vmatprep.mubr.f32.mxu0 %v1213
    %1444 = vmatmul.mubr.f32.gmra.mrb[0].mxu0 %v1212
    %v1445 = vpop.f32.mrb[0].mxu0
    %v1446 = vadd.f32 %v1367, %v1445
    %v1447 = vpop.f32.mrb[0].mxu0
    %v1448 = vadd.f32 %v1371, %v1447
    %1449 = vdwg.mxu0
    %1450 = vmatprep.subr.mxu0 %v1315
    %1451 = vmatpush1.msra.mxu0 %v1314
    %1452 = vmatprep.subr.mxu0 %v1318
    %1453 = vmatpush1.msra.mxu0 %v1317
    %1454 = vmatprep.subr.mxu0 %v1321
    %1455 = vmatpush1.msra.mxu0 %v1320
    %1456 = vmatprep.subr.mxu0 %v1324
    %1457 = vmatpush1.msra.mxu0 %v1323
    %1458 = vmatprep.subr.mxu0 %v1327
    %1459 = vmatpush1.msra.mxu0 %v1326
    %1460 = vmatprep.subr.mxu0 %v1330
    %1461 = vmatpush1.msra.mxu0 %v1329
    %1462 = vmatprep.subr.mxu0 %v1333
    %1463 = vmatpush1.msra.mxu0 %v1332
    %1464 = vmatprep.subr.mxu0 %v1336
    %1465 = vmatpush1.msra.mxu0 %v1335
    %1466 = vmatprep.subr.mxu0 %v1339
    %1467 = vmatpush1.msra.mxu0 %v1338
    %1468 = vmatprep.subr.mxu0 %v1342
    %1469 = vmatpush1.msra.mxu0 %v1341
    %1470 = vmatprep.subr.mxu0 %v1345
    %1471 = vmatpush1.msra.mxu0 %v1344
    %1472 = vmatprep.subr.mxu0 %v1348
    %1473 = vmatpush1.msra.mxu0 %v1347
    %1474 = vmatprep.subr.mxu0 %v1351
    %1475 = vmatpush1.msra.mxu0 %v1350
    %1476 = vmatprep.subr.mxu0 %v1354
    %1477 = vmatpush1.msra.mxu0 %v1353
    %1478 = vmatprep.subr.mxu0 %v1357
    %1479 = vmatpush1.msra.mxu0 %v1356
    %1480 = vmatprep.subr.mxu0 %v1360
    %1481 = vmatpush1.msra.mxu0 %v1359
    %1482 = vmatprep.subr.mxu0 0.0
    %1483 = vmatpush1.msra.mxu0 0.0
    %1484 = vmatprep.subr.mxu0 0.0
    %1485 = vmatpush1.msra.mxu0 0.0
    %1486 = vmatprep.subr.mxu0 0.0
    %1487 = vmatpush1.msra.mxu0 0.0
    %1488 = vmatprep.subr.mxu0 0.0
    %1489 = vmatpush1.msra.mxu0 0.0
    %1490 = vmatprep.subr.mxu0 0.0
    %1491 = vmatpush1.msra.mxu0 0.0
    %1492 = vmatprep.subr.mxu0 0.0
    %1493 = vmatpush1.msra.mxu0 0.0
    %1494 = vmatprep.subr.mxu0 0.0
    %1495 = vmatpush1.msra.mxu0 0.0
    %1496 = vmatprep.subr.mxu0 0.0
    %1497 = vmatpush1.msra.mxu0 0.0
    %1498 = vmatprep.subr.mxu0 0.0
    %1499 = vmatpush1.msra.mxu0 0.0
    %1500 = vmatprep.subr.mxu0 0.0
    %1501 = vmatpush1.msra.mxu0 0.0
    %1502 = vmatprep.subr.mxu0 0.0
    %1503 = vmatpush1.msra.mxu0 0.0
    %1504 = vmatprep.subr.mxu0 0.0
    %1505 = vmatpush1.msra.mxu0 0.0
    %1506 = vmatprep.subr.mxu0 0.0
    %1507 = vmatpush1.msra.mxu0 0.0
    %1508 = vmatprep.subr.mxu0 0.0
    %1509 = vmatpush1.msra.mxu0 0.0
    %1510 = vmatprep.subr.mxu0 0.0
    %1511 = vmatpush1.msra.mxu0 0.0
    %1512 = vmatprep.subr.mxu0 0.0
    %1513 = vmatpush1.msra.mxu0 0.0
    %1514 = vmatprep.mubr.f32.mxu0 0.0
    %1515 = vmatmul.mubr.f32.gmra.mrb[0].mxu0 %v1214
    %v1516 = vpop.f32.mrb[0].mxu0
    %v1517 = vadd.f32 %v1446, %v1516
    %v1518 = vpop.f32.mrb[0].mxu0
    %v1519 = vadd.f32 %v1448, %v1518
    %1520 = vdwg.mxu0
    %1521 = vmatprep.subr.mxu0 0.0
    %1522 = vmatpush1.msra.mxu0 %v1220
    %1523 = vmatprep.subr.mxu0 0.0
    %1524 = vmatpush1.msra.mxu0 %v1223
    %1525 = vmatprep.subr.mxu0 0.0
    %1526 = vmatpush1.msra.mxu0 %v1226
    %1527 = vmatprep.subr.mxu0 0.0
    %1528 = vmatpush1.msra.mxu0 %v1229
    %1529 = vmatprep.subr.mxu0 0.0
    %1530 = vmatpush1.msra.mxu0 %v1232
    %1531 = vmatprep.subr.mxu0 0.0
    %1532 = vmatpush1.msra.mxu0 %v1235
    %1533 = vmatprep.subr.mxu0 0.0
    %1534 = vmatpush1.msra.mxu0 %v1238
    %1535 = vmatprep.subr.mxu0 0.0
    %1536 = vmatpush1.msra.mxu0 %v1241
    %1537 = vmatprep.subr.mxu0 0.0
    %1538 = vmatpush1.msra.mxu0 %v1244
    %1539 = vmatprep.subr.mxu0 0.0
    %1540 = vmatpush1.msra.mxu0 %v1247
    %1541 = vmatprep.subr.mxu0 0.0
    %1542 = vmatpush1.msra.mxu0 %v1250
    %1543 = vmatprep.subr.mxu0 0.0
    %1544 = vmatpush1.msra.mxu0 %v1253
    %1545 = vmatprep.subr.mxu0 0.0
    %1546 = vmatpush1.msra.mxu0 %v1256
    %1547 = vmatprep.subr.mxu0 0.0
    %1548 = vmatpush1.msra.mxu0 %v1259
    %1549 = vmatprep.subr.mxu0 0.0
    %1550 = vmatpush1.msra.mxu0 %v1262
    %1551 = vmatprep.subr.mxu0 0.0
    %1552 = vmatpush1.msra.mxu0 %v1265
    %1553 = vmatprep.subr.mxu0 0.0
    %1554 = vmatpush1.msra.mxu0 %v1268
    %1555 = vmatprep.subr.mxu0 0.0
    %1556 = vmatpush1.msra.mxu0 %v1271
    %1557 = vmatprep.subr.mxu0 0.0
    %1558 = vmatpush1.msra.mxu0 %v1274
    %1559 = vmatprep.subr.mxu0 0.0
    %1560 = vmatpush1.msra.mxu0 %v1277
    %1561 = vmatprep.subr.mxu0 0.0
    %1562 = vmatpush1.msra.mxu0 %v1280
    %1563 = vmatprep.subr.mxu0 0.0
    %1564 = vmatpush1.msra.mxu0 %v1283
    %1565 = vmatprep.subr.mxu0 0.0
    %1566 = vmatpush1.msra.mxu0 %v1286
    %1567 = vmatprep.subr.mxu0 0.0
    %1568 = vmatpush1.msra.mxu0 %v1289
    %1569 = vmatprep.subr.mxu0 0.0
    %1570 = vmatpush1.msra.mxu0 %v1292
    %1571 = vmatprep.subr.mxu0 0.0
    %1572 = vmatpush1.msra.mxu0 %v1295
    %1573 = vmatprep.subr.mxu0 0.0
    %1574 = vmatpush1.msra.mxu0 %v1298
    %1575 = vmatprep.subr.mxu0 0.0
    %1576 = vmatpush1.msra.mxu0 %v1301
    %1577 = vmatprep.subr.mxu0 0.0
    %1578 = vmatpush1.msra.mxu0 %v1304
    %1579 = vmatprep.subr.mxu0 0.0
    %1580 = vmatpush1.msra.mxu0 %v1307
    %1581 = vmatprep.subr.mxu0 0.0
    %1582 = vmatpush1.msra.mxu0 %v1310
    %1583 = vmatprep.subr.mxu0 0.0
    %1584 = vmatpush1.msra.mxu0 %v1313
    %1585 = vmatprep.mubr.f32.mxu0 %v1213
    %1586 = vmatmul.mubr.f32.gmra.mrb[0].mxu0 %v1212
    %v1587 = vpop.f32.mrb[0].mxu0
    %v1588 = vadd.f32 %v1375, %v1587
    %v1589 = vpop.f32.mrb[0].mxu0
    %1590 = vdwg.mxu0
    %1591 = vmatprep.subr.mxu0 0.0
    %1592 = vmatpush1.msra.mxu0 %v1316
    %1593 = vmatprep.subr.mxu0 0.0
    %1594 = vmatpush1.msra.mxu0 %v1319
    %1595 = vmatprep.subr.mxu0 0.0
    %1596 = vmatpush1.msra.mxu0 %v1322
    %1597 = vmatprep.subr.mxu0 0.0
    %1598 = vmatpush1.msra.mxu0 %v1325
    %1599 = vmatprep.subr.mxu0 0.0
    %1600 = vmatpush1.msra.mxu0 %v1328
    %1601 = vmatprep.subr.mxu0 0.0
    %1602 = vmatpush1.msra.mxu0 %v1331
    %1603 = vmatprep.subr.mxu0 0.0
    %1604 = vmatpush1.msra.mxu0 %v1334
    %1605 = vmatprep.subr.mxu0 0.0
    %1606 = vmatpush1.msra.mxu0 %v1337
    %1607 = vmatprep.subr.mxu0 0.0
    %1608 = vmatpush1.msra.mxu0 %v1340
    %1609 = vmatprep.subr.mxu0 0.0
    %1610 = vmatpush1.msra.mxu0 %v1343
    %1611 = vmatprep.subr.mxu0 0.0
    %1612 = vmatpush1.msra.mxu0 %v1346
    %1613 = vmatprep.subr.mxu0 0.0
    %1614 = vmatpush1.msra.mxu0 %v1349
    %1615 = vmatprep.subr.mxu0 0.0
    %1616 = vmatpush1.msra.mxu0 %v1352
    %1617 = vmatprep.subr.mxu0 0.0
    %1618 = vmatpush1.msra.mxu0 %v1355
    %1619 = vmatprep.subr.mxu0 0.0
    %1620 = vmatpush1.msra.mxu0 %v1358
    %1621 = vmatprep.subr.mxu0 0.0
    %1622 = vmatpush1.msra.mxu0 %v1361
    %1623 = vmatprep.subr.mxu0 0.0
    %1624 = vmatpush1.msra.mxu0 0.0
    %1625 = vmatprep.subr.mxu0 0.0
    %1626 = vmatpush1.msra.mxu0 0.0
    %1627 = vmatprep.subr.mxu0 0.0
    %1628 = vmatpush1.msra.mxu0 0.0
    %1629 = vmatprep.subr.mxu0 0.0
    %1630 = vmatpush1.msra.mxu0 0.0
    %1631 = vmatprep.subr.mxu0 0.0
    %1632 = vmatpush1.msra.mxu0 0.0
    %1633 = vmatprep.subr.mxu0 0.0
    %1634 = vmatpush1.msra.mxu0 0.0
    %1635 = vmatprep.subr.mxu0 0.0
    %1636 = vmatpush1.msra.mxu0 0.0
    %1637 = vmatprep.subr.mxu0 0.0
    %1638 = vmatpush1.msra.mxu0 0.0
    %1639 = vmatprep.subr.mxu0 0.0
    %1640 = vmatpush1.msra.mxu0 0.0
    %1641 = vmatprep.subr.mxu0 0.0
    %1642 = vmatpush1.msra.mxu0 0.0
    %1643 = vmatprep.subr.mxu0 0.0
    %1644 = vmatpush1.msra.mxu0 0.0
    %1645 = vmatprep.subr.mxu0 0.0
    %1646 = vmatpush1.msra.mxu0 0.0
    %1647 = vmatprep.subr.mxu0 0.0
    %1648 = vmatpush1.msra.mxu0 0.0
    %1649 = vmatprep.subr.mxu0 0.0
    %1650 = vmatpush1.msra.mxu0 0.0
    %1651 = vmatprep.subr.mxu0 0.0
    %1652 = vmatpush1.msra.mxu0 0.0
    %1653 = vmatprep.subr.mxu0 0.0
    %1654 = vmatpush1.msra.mxu0 0.0
    %1655 = vmatprep.mubr.f32.mxu0 0.0
    %1656 = vmatmul.mubr.f32.gmra.mrb[0].mxu0 %v1214
    %v1657 = vpop.f32.mrb[0].mxu0
    %v1658 = vadd.f32 %v1588, %v1657
    %v1659 = vpop.f32.mrb[0].mxu0
    %1660 = vdwg.mxu0
    %v1661 = vld [vmem:[%s1] sm:$0xff]
    %v1662 = vld [vmem:[%s1 + $0x8] sm:$0xff]
    %1665 = vrot.lane.b32.xlu0 %v1519, 64
    %v1666 = vpop.permute.xlu0 %1665
    %1667 = vrot.lane.b32.xlu0 %v1658, 64
    %v1668 = vpop.permute.xlu0 %1667
    %v1669 = vsel %vm94, %v1666, %v1668
    %v1672 = vmul.f32 %v1661, %v1669
    %v1673 = vmul.f32 %v1662, %v1668
    %v1674 = vadd.f32 %v1672, %v1517
    %v1675 = vadd.f32 %v1673, %v1519
    %1676 = vst [vmem:[#allocation5] sm:$0xff] %v1674
    %1677 = vst.msk [vmem:[#allocation5 + $0x8] sm:$0xff] %vm94, %v1675
    %v1678 = vld [vmem:[%s2] sm:$0xff]
    %v1679 = vld [vmem:[%s2 + $0x8] sm:$0xff]
    %v1680 = vld [vmem:[%s2 + $0x10] sm:$0xff]
    %v1681 = vadd.f32 %v1215, %v1678
    %v1682 = vadd.f32 %v1216, %v1679
    %v1683 = vadd.f32 %v1217, %v1680
    %v1684 = vlaneseq
    %v1685 = vand.u32 %v1684, 127
    %v1686 = vadd.s32 %v1685, 128
    %v1687 = vadd.s32 %v1685, 256
    %v1688 = vmax.f32 %v1681, %v1682
    %v1689 = vmax.f32 %v1688, %v1683
    %1690 = vmax.xlane.f32.xlu0 %v1689
    %v1691 = vpop.xlane.xlu0 %1690
    %vm1692 = vcmp.ge.f32.partialorder %v1681, %v1691
    %vm1693 = vcmp.ge.f32.partialorder %v1682, %v1691
    %vm1694 = vcmp.ge.f32.partialorder %v1683, %v1691
    %v1695 = vsel %vm1692, %v1685, 384
    %v1696 = vsel %vm1693, %v1686, 384
    %v1697 = vsel %vm1694, %v1687, 384
    %vm1698 = vcmp.lt.s32.totalorder %v1695, %v1696
    %v1699 = vsel %vm1698, %v1695, %v1696
    %vm1700 = vcmp.lt.s32.totalorder %v1699, %v1697
    %v1701 = vsel %vm1700, %v1699, %v1697
    %v1702 = vand.u32 %v1701, 65535
    %v1703 = vshra.s32 %v1701, 16
    %v1704 = vcvt.s32.f32 %v1702
    %v1705 = vcvt.s32.f32 %v1703
    %1706 = vmin.xlane.f32.xlu0 %v1705
    %v1707 = vpop.xlane.xlu0 %1706
    %vm1708 = vcmp.eq.f32.partialorder %v1705, %v1707
    %v1709 = vsel %vm1708, %v1704, inf
    %1710 = vmin.xlane.f32.xlu0 %v1709
    %v1711 = vpop.xlane.xlu0 %1710
    %v1712 = vcvt.f32.s32 %v1711
    %v1713 = vcvt.f32.s32 %v1707
    %v1714 = vshll.u32 %v1713, 16
    %v1715 = vadd.s32 %v1714, %v1712
    %vm1716 = vcmp.eq.s32.totalorder %v1685, %v1715
    %vm1717 = vcmp.eq.s32.totalorder %v1686, %v1715
    %vm1718 = vcmp.eq.s32.totalorder %v1687, %v1715
    %v1719 = vsel %vm1716, 1, 0
    %v1720 = vsel %vm1717, 1, 0
    %v1721 = vsel %vm1718, 1, 0
    %v1722 = vcvt.s32.f32 %v1719
    %v1723 = vcvt.s32.f32 %v1720
    %v1724 = vcvt.s32.f32 %v1721
    %1725 = vst [vmem:[#allocation6] sm:$0xff] %v1722
    %1726 = vst [vmem:[#allocation6 + $0x8] sm:$0xff] %v1723
    %1727 = vst [vmem:[#allocation6 + $0x10] sm:$0xff] %v1724
    // Predicated region
    $region62: #{tpu_custom_call.1} parent=1 // pred_check
      _
    $region63: #{tpu_custom_call.1} parent=1 // pred_check_branch
      %1729 = sbr.rel (0) target = $region65
    $region64: #{tpu_custom_call.1} parent=1 // pred_region
      %s1731 = ssub.s32 256, 256
      %1732 = vsyncadd [#allocation4], %s1731
      %s1734 = sshll.u32 [#allocation5], 4
      %s1735 = int_to_ptr.vmem [resolvable:$true] %s1734
      %1737 = dma.vmem_to_hbm [thread:$0]  %s1735, 256, %s14, [#allocation4]
    $region65: #{tpu_custom_call.1} parent=1 // pred_fallthru
      _
    // Predicated region
    $region66: #{tpu_custom_call.1} parent=1 // pred_check
      _
    $region67: #{tpu_custom_call.1} parent=1 // pred_check_branch
      %1739 = sbr.rel (0) target = $region69
    $region68: #{tpu_custom_call.1} parent=1 // pred_region
      %s1741 = ssub.s32 384, 384
      %1742 = vsyncadd [#allocation7], %s1741
      %s1744 = sshll.u32 [#allocation6], 4
      %s1745 = int_to_ptr.vmem [resolvable:$true] %s1744
      %1747 = dma.vmem_to_hbm [thread:$0]  %s1745, 384, %s15, [#allocation7]
    $region69: #{tpu_custom_call.1} parent=1 // pred_fallthru
      _
    // Predicated region
    $region70: #{tpu_custom_call.1} parent=1 // pred_check
      _
    $region71: #{tpu_custom_call.1} parent=1 // pred_check_branch
      %1749 = sbr.rel (0) target = $region73
    $region72: #{tpu_custom_call.1} parent=1 // pred_region
      %1750 = dma.done [#allocation4], 256
    $region73: #{tpu_custom_call.1} parent=1 // pred_fallthru
      _
    // Predicated region
    $region74: #{tpu_custom_call.1} parent=1 // pred_check
      _
    $region75: #{tpu_custom_call.1} parent=1 // pred_check_branch
      %1752 = sbr.rel (0) target = $region77
    $region76: #{tpu_custom_call.1} parent=1 // pred_region
      %1753 = dma.done [#allocation7], 384
    $region77: #{tpu_custom_call.1} parent=1 // pred_fallthru
      _
    %1754 = vsyncpa [#allocation3], 1
    %1755 = vsyncpa [#allocation4], 1
    %1756 = vsyncpa [#allocation7], 1

</llo_original>
